<compile_context>
chip_gen: v7x
topology: tpu7x:2x2x1
jax: 0.10.0
libtpu: 0.0.40
codegen_flags: <defaults>
</compile_context>

<pallas_src>
import math
import functools

import jax
import jax.numpy as jnp
from jax.experimental import pallas as pl
from jax.experimental.pallas import tpu as pltpu


# ----------------------------- kernel helpers -----------------------------

def _normalize(x, eps=1e-5):
    # LayerNorm without the affine part (gamma/beta are folded into the
    # following matmul weights on the host).
    mu = jnp.mean(x, axis=-1, keepdims=True)
    var = jnp.mean(jnp.square(x - mu), axis=-1, keepdims=True)
    return (x - mu) * jax.lax.rsqrt(var + eps)


def _softmax_lastdim(s):
    m = jnp.max(s, axis=-1, keepdims=True)
    e = jnp.exp(s - m)
    return e * pl.reciprocal(jnp.sum(e, axis=-1, keepdims=True), approx=True)


# ------------------------------ Pallas kernel ------------------------------

def block_kernel(n_head,
                 x_img_ref, x_radar_ref,
                 w_qkv_i, b_qkv_i, w_qkv_r, b_qkv_r,
                 wproj_h, bproj,
                 wfc1, bfc1, wfc2, bfc2,
                 o_img_ref, o_radar_ref):
    xi = x_img_ref[0]      # (T, C)
    xr = x_radar_ref[0]    # (T, C)
    T, C = xi.shape
    nh = n_head
    hd = C // nh

    # ---- stack both streams along rows: shared-weight ops see (2T, C) ----
    x2 = jnp.concatenate([xi, xr], axis=0)          # rows [0:T]=img, [T:2T]=radar
    x2_n = _normalize(x2)                           # LN1 affine folded into QKV

    # ---- fused QKV projections (lanes ordered k|q|v; scale+LN1 pre-folded) ----
    qkv_i = jnp.dot(x2_n[:T], w_qkv_i[...],
                    preferred_element_type=jnp.float32) + b_qkv_i[0]   # (T, 3C)
    qkv_r = jnp.dot(x2_n[T:], w_qkv_r[...],
                    preferred_element_type=jnp.float32) + b_qkv_r[0]   # (T, 3C)

    def heads(x, off):
        # (T, 3C) -> (nh, T, hd): head-batched view of one of k/q/v.
        return jnp.stack(
            [x[:, off + h * hd: off + (h + 1) * hd] for h in range(nh)], axis=0)

    k_i = heads(qkv_i, 0)
    q_i = heads(qkv_i, C)
    v_i = heads(qkv_i, 2 * C)
    k_r = heads(qkv_r, 0)
    q_r = heads(qkv_r, C)
    v_r = heads(qkv_r, 2 * C)

    # ---- head-batched cross attention (scale already folded into q) ----
    # att_img: radar queries attend to image keys/values (and vice versa).
    att_i = _softmax_lastdim(
        jnp.einsum('hqd,hkd->hqk', q_r, k_i, preferred_element_type=jnp.float32))
    att_r = _softmax_lastdim(
        jnp.einsum('hqd,hkd->hqk', q_i, k_r, preferred_element_type=jnp.float32))
    out_i = jnp.einsum('hqk,hkd->hqd', att_i, v_i,
                       preferred_element_type=jnp.float32)   # (nh, T, hd)
    out_r = jnp.einsum('hqk,hkd->hqd', att_r, v_r,
                       preferred_element_type=jnp.float32)   # (nh, T, hd)

    # ---- shared output projection: head-batched matmul + head-sum, both streams ----
    out_2 = jnp.concatenate([out_i, out_r], axis=1)           # (nh, 2T, hd)
    proj = jnp.einsum('htd,hdc->htc', out_2, wproj_h[...],
                      preferred_element_type=jnp.float32)     # (nh, 2T, C)
    proj = jnp.sum(proj, axis=0) + bproj[0]                   # (2T, C)

    x2a = x2 + proj                                           # attention residual

    # ---- shared MLP (LN2 affine folded into wfc1/bfc1) + residual ----
    h1 = jnp.maximum(
        jnp.dot(_normalize(x2a), wfc1[...],
                preferred_element_type=jnp.float32) + bfc1[0], 0.0)    # (2T, H)
    y2 = x2a + jnp.dot(h1, wfc2[...],
                       preferred_element_type=jnp.float32) + bfc2[0]   # (2T, C)

    o_img_ref[0] = y2[:T]
    o_radar_ref[0] = y2[T:]


# ------------------------------ host wrapper ------------------------------

def block_forward(x_img, x_radar, params, n_head):
    (ln1_g, ln1_b, ln2_g, ln2_b,
     wik, bik, wiq, biq, wiv, biv,
     wrk, brk, wrq, brq, wrv, brv,
     wproj, bproj, wfc1, bfc1, wfc2, bfc2) = params

    B, T, C = x_img.shape
    hd = C // n_head
    scale = 1.0 / math.sqrt(hd)

    # Host-side weight packing (zero kernel cost):
    #   * fuse k|q|v into one (C, 3C) weight per stream,
    #   * fold the attention scale into the query weights/biases,
    #   * fold LN1 gamma/beta into the QKV weights/biases, and LN2 gamma/beta
    #     into the MLP fc1 weights/biases (the in-kernel LN is pure
    #     normalization),
    #   * reshape the shared projection to (n_head, hd, C) for head-batched proj.
    w_qkv_i = jnp.concatenate([wik, wiq * scale, wiv], axis=1)
    b_qkv_i = jnp.concatenate([bik, biq * scale, biv], axis=1)
    w_qkv_r = jnp.concatenate([wrk, wrq * scale, wrv], axis=1)
    b_qkv_r = jnp.concatenate([brk, brq * scale, brv], axis=1)

    b_qkv_i = b_qkv_i + ln1_b @ w_qkv_i
    w_qkv_i = ln1_g.reshape(C, 1) * w_qkv_i
    b_qkv_r = b_qkv_r + ln1_b @ w_qkv_r
    w_qkv_r = ln1_g.reshape(C, 1) * w_qkv_r

    bfc1_f = bfc1 + ln2_b @ wfc1
    wfc1_f = ln2_g.reshape(C, 1) * wfc1

    wproj_h = wproj.reshape(n_head, hd, C)

    packed = [w_qkv_i, b_qkv_i, w_qkv_r, b_qkv_r,
              wproj_h, bproj, wfc1_f, bfc1_f, wfc2, bfc2]

    seq_spec = pl.BlockSpec((1, T, C), lambda b: (b, 0, 0))

    def full_spec(a):
        nd = a.ndim
        return pl.BlockSpec(a.shape, lambda b, _nd=nd: (0,) * _nd)

    in_specs = [seq_spec, seq_spec] + [full_spec(p) for p in packed]
    out_specs = [seq_spec, seq_spec]
    out_shape = (jax.ShapeDtypeStruct((B, T, C), jnp.float32),
                 jax.ShapeDtypeStruct((B, T, C), jnp.float32))

    return pl.pallas_call(
        functools.partial(block_kernel, n_head),
        out_shape=out_shape,
        grid_spec=pltpu.PrefetchScalarGridSpec(
            num_scalar_prefetch=0,
            grid=(B,),
            in_specs=in_specs,
            out_specs=out_specs,
        ),
        compiler_params=pltpu.CompilerParams(
            dimension_semantics=("parallel",),
            vmem_limit_bytes=32 * 1024 * 1024,
        ),
    )(x_img, x_radar, *packed)


# --------------------------- pure-JAX reference ---------------------------

def block_reference(x_img, x_radar, params, n_head):
    (ln1_g, ln1_b, ln2_g, ln2_b,
     wik, bik, wiq, biq, wiv, biv,
     wrk, brk, wrq, brq, wrv, brv,
     wproj, bproj, wfc1, bfc1, wfc2, bfc2) = params

    B, T, C = x_img.shape
    hd = C // n_head
    scale = 1.0 / math.sqrt(hd)

    def ln(x, g, b):
        mu = jnp.mean(x, axis=-1, keepdims=True)
        var = jnp.mean(jnp.square(x - mu), axis=-1, keepdims=True)
        return (x - mu) * jax.lax.rsqrt(var + 1e-5) * g[0] + b[0]

    def lin(x, w, b):
        return x @ w + b[0]

    def split_heads(y):  # (B,T,C) -> (B,nh,T,hd)
        return y.reshape(B, T, n_head, hd).transpose(0, 2, 1, 3)

    xi_ln = ln(x_img, ln1_g, ln1_b)
    xr_ln = ln(x_radar, ln1_g, ln1_b)

    k_img = split_heads(lin(xi_ln, wik, bik))
    q_img = split_heads(lin(xi_ln, wiq, biq))
    v_img = split_heads(lin(xi_ln, wiv, biv))
    k_rad = split_heads(lin(xr_ln, wrk, brk))
    q_rad = split_heads(lin(xr_ln, wrq, brq))
    v_rad = split_heads(lin(xr_ln, wrv, brv))

    att_img = jax.nn.softmax(q_rad @ k_img.transpose(0, 1, 3, 2) * scale, axis=-1)
    att_rad = jax.nn.softmax(q_img @ k_rad.transpose(0, 1, 3, 2) * scale, axis=-1)
    out_img = (att_img @ v_img).transpose(0, 2, 1, 3).reshape(B, T, C)
    out_rad = (att_rad @ v_rad).transpose(0, 2, 1, 3).reshape(B, T, C)

    out_img = lin(out_img, wproj, bproj)
    out_rad = lin(out_rad, wproj, bproj)

    xio = x_img + out_img
    xro = x_radar + out_rad

    def mlp(x):
        return lin(jnp.maximum(lin(x, wfc1, bfc1), 0.0), wfc2, bfc2)

    return xio + mlp(ln(xio, ln2_g, ln2_b)), xro + mlp(ln(xro, ln2_g, ln2_b))


# ---------------------------------- main ----------------------------------

if __name__ == "__main__":
    B, T, C = 2, 8, 32
    n_head = 4
    block_exp = 4
    H = block_exp * C

    key = jax.random.PRNGKey(0)
    keys = jax.random.split(key, 32)
    ki = iter(range(32))

    def init_lin(din, dout):
        w = jax.random.normal(keys[next(ki)], (din, dout), jnp.float32) * 0.02
        b = jax.random.normal(keys[next(ki)], (1, dout), jnp.float32) * 0.02
        return w, b

    ln1_g = 1.0 + 0.1 * jax.random.normal(keys[next(ki)], (1, C), jnp.float32)
    ln1_b = 0.1 * jax.random.normal(keys[next(ki)], (1, C), jnp.float32)
    ln2_g = 1.0 + 0.1 * jax.random.normal(keys[next(ki)], (1, C), jnp.float32)
    ln2_b = 0.1 * jax.random.normal(keys[next(ki)], (1, C), jnp.float32)

    wik, bik = init_lin(C, C)
    wiq, biq = init_lin(C, C)
    wiv, biv = init_lin(C, C)
    wrk, brk = init_lin(C, C)
    wrq, brq = init_lin(C, C)
    wrv, brv = init_lin(C, C)
    wproj, bproj = init_lin(C, C)
    wfc1, bfc1 = init_lin(C, H)
    wfc2, bfc2 = init_lin(H, C)

    params = [ln1_g, ln1_b, ln2_g, ln2_b,
              wik, bik, wiq, biq, wiv, biv,
              wrk, brk, wrq, brq, wrv, brv,
              wproj, bproj, wfc1, bfc1, wfc2, bfc2]

    x_img = jax.random.normal(keys[next(ki)], (B, T, C), jnp.float32)
    x_radar = jax.random.normal(keys[next(ki)], (B, T, C), jnp.float32)

    fwd = jax.jit(block_forward, static_argnums=(3,))
    out_img, out_radar = fwd(x_img, x_radar, params, n_head)
    jax.block_until_ready((out_img, out_radar))

    ref_img, ref_radar = block_reference(x_img, x_radar, params, n_head)
    assert jnp.allclose(out_img, ref_img, rtol=2e-3, atol=2e-3)
    assert jnp.allclose(out_radar, ref_radar, rtol=2e-3, atol=2e-3)

    print("KERNEL_OK")
</pallas_src>

<mosaic_0001>
module attributes {stable_mosaic.version = 11 : i64} {
  func.func @block_kernel(%arg0: i32, %arg1: memref<1x8x32xf32, #tpu.memory_space<vmem>>, %arg2: memref<1x8x32xf32, #tpu.memory_space<vmem>>, %arg3: memref<32x96xf32, #tpu.memory_space<vmem>>, %arg4: memref<1x96xf32, #tpu.memory_space<vmem>>, %arg5: memref<32x96xf32, #tpu.memory_space<vmem>>, %arg6: memref<1x96xf32, #tpu.memory_space<vmem>>, %arg7: memref<4x8x32xf32, #tpu.memory_space<vmem>>, %arg8: memref<1x32xf32, #tpu.memory_space<vmem>>, %arg9: memref<32x128xf32, #tpu.memory_space<vmem>>, %arg10: memref<1x128xf32, #tpu.memory_space<vmem>>, %arg11: memref<128x32xf32, #tpu.memory_space<vmem>>, %arg12: memref<1x32xf32, #tpu.memory_space<vmem>>, %arg13: memref<1x8x32xf32, #tpu.memory_space<vmem>>, %arg14: memref<1x8x32xf32, #tpu.memory_space<vmem>>) attributes {dimension_semantics = [#tpu.dimension_semantics<parallel>], iteration_bounds = array<i64: 2>, scalar_prefetch = 0 : i64, scratch_operands = 0 : i64, tpu.core_type = #tpu.core_type<tc>, window_params = [{transform_indices = @transform_0, window_bounds = array<i64: 1, 8, 32>}, {transform_indices = @transform_1, window_bounds = array<i64: 1, 8, 32>}, {pipeline_mode = #tpu.pipeline_mode<synchronous>, transform_indices = @transform_2, window_bounds = array<i64: 32, 96>}, {pipeline_mode = #tpu.pipeline_mode<synchronous>, transform_indices = @transform_3, window_bounds = array<i64: 1, 96>}, {pipeline_mode = #tpu.pipeline_mode<synchronous>, transform_indices = @transform_4, window_bounds = array<i64: 32, 96>}, {pipeline_mode = #tpu.pipeline_mode<synchronous>, transform_indices = @transform_5, window_bounds = array<i64: 1, 96>}, {pipeline_mode = #tpu.pipeline_mode<synchronous>, transform_indices = @transform_6, window_bounds = array<i64: 4, 8, 32>}, {pipeline_mode = #tpu.pipeline_mode<synchronous>, transform_indices = @transform_7, window_bounds = array<i64: 1, 32>}, {pipeline_mode = #tpu.pipeline_mode<synchronous>, transform_indices = @transform_8, window_bounds = array<i64: 32, 128>}, {pipeline_mode = #tpu.pipeline_mode<synchronous>, transform_indices = @transform_9, window_bounds = array<i64: 1, 128>}, {pipeline_mode = #tpu.pipeline_mode<synchronous>, transform_indices = @transform_10, window_bounds = array<i64: 128, 32>}, {pipeline_mode = #tpu.pipeline_mode<synchronous>, transform_indices = @transform_11, window_bounds = array<i64: 1, 32>}, {transform_indices = @transform_12, window_bounds = array<i64: 1, 8, 32>}, {transform_indices = @transform_13, window_bounds = array<i64: 1, 8, 32>}]} {
    %c0 = arith.constant 0 : index
    %c0_0 = arith.constant 0 : index
    %c0_1 = arith.constant 0 : index
    %0 = vector.load %arg1[%c0, %c0_0, %c0_1] : memref<1x8x32xf32, #tpu.memory_space<vmem>>, vector<1x8x32xf32>
    %1 = vector.shape_cast %0 : vector<1x8x32xf32> to vector<8x32xf32>
    %c0_2 = arith.constant 0 : index
    %c0_3 = arith.constant 0 : index
    %c0_4 = arith.constant 0 : index
    %2 = vector.load %arg2[%c0_2, %c0_3, %c0_4] : memref<1x8x32xf32, #tpu.memory_space<vmem>>, vector<1x8x32xf32>
    %3 = vector.shape_cast %2 : vector<1x8x32xf32> to vector<8x32xf32>
    %4 = tpu.concatenate %1, %3 in 0 : vector<8x32xf32>, vector<8x32xf32> -> vector<16x32xf32>
    %cst = arith.constant dense<0.000000e+00> : vector<16xf32>
    %5 = vector.multi_reduction <add>, %4, %cst [1] : vector<16x32xf32> to vector<16xf32>
    %6 = vector.shape_cast %5 : vector<16xf32> to vector<16x1xf32>
    %cst_5 = arith.constant 3.200000e+01 : f32
    %7 = vector.broadcast %cst_5 : f32 to vector<16x1xf32>
    %8 = arith.divf %6, %7 : vector<16x1xf32>
    %9 = vector.broadcast %8 : vector<16x1xf32> to vector<16x32xf32>
    %10 = arith.subf %4, %9 : vector<16x32xf32>
    %11 = arith.mulf %10, %10 : vector<16x32xf32>
    %cst_6 = arith.constant dense<0.000000e+00> : vector<16xf32>
    %12 = vector.multi_reduction <add>, %11, %cst_6 [1] : vector<16x32xf32> to vector<16xf32>
    %13 = vector.shape_cast %12 : vector<16xf32> to vector<16x1xf32>
    %cst_7 = arith.constant 3.200000e+01 : f32
    %14 = vector.broadcast %cst_7 : f32 to vector<16x1xf32>
    %15 = arith.divf %13, %14 : vector<16x1xf32>
    %16 = vector.broadcast %8 : vector<16x1xf32> to vector<16x32xf32>
    %17 = arith.subf %4, %16 : vector<16x32xf32>
    %cst_8 = arith.constant 9.99999974E-6 : f32
    %18 = vector.broadcast %cst_8 : f32 to vector<16x1xf32>
    %19 = arith.addf %15, %18 : vector<16x1xf32>
    %20 = math.rsqrt %19 : vector<16x1xf32>
    %21 = vector.broadcast %20 : vector<16x1xf32> to vector<16x32xf32>
    %22 = arith.mulf %17, %21 : vector<16x32xf32>
    %23 = vector.extract_strided_slice %22 {offsets = [0, 0], sizes = [8, 32], strides = [1, 1]} : vector<16x32xf32> to vector<8x32xf32>
    %c0_9 = arith.constant 0 : index
    %c0_10 = arith.constant 0 : index
    %24 = vector.load %arg3[%c0_9, %c0_10] : memref<32x96xf32, #tpu.memory_space<vmem>>, vector<32x96xf32>
    %cst_11 = arith.constant dense<0.000000e+00> : vector<8x96xf32>
    %25 = tpu.matmul %23, %24, %cst_11 {dimension_numbers = #tpu.dot_dimension_numbers<[1], [0], [0], [1], [0, 0, 1, 1], [], []>} : vector<8x32xf32>, vector<32x96xf32>, vector<8x96xf32> -> vector<8x96xf32>
    %c0_12 = arith.constant 0 : index
    %c0_13 = arith.constant 0 : index
    %26 = vector.load %arg4[%c0_12, %c0_13] : memref<1x96xf32, #tpu.memory_space<vmem>>, vector<1x96xf32>
    %27 = vector.shape_cast %26 : vector<1x96xf32> to vector<96xf32>
    %28 = vector.shape_cast %27 : vector<96xf32> to vector<1x96xf32>
    %29 = vector.broadcast %28 : vector<1x96xf32> to vector<8x96xf32>
    %30 = arith.addf %25, %29 : vector<8x96xf32>
    %31 = vector.extract_strided_slice %22 {offsets = [8, 0], sizes = [8, 32], strides = [1, 1]} : vector<16x32xf32> to vector<8x32xf32>
    %c0_14 = arith.constant 0 : index
    %c0_15 = arith.constant 0 : index
    %32 = vector.load %arg5[%c0_14, %c0_15] : memref<32x96xf32, #tpu.memory_space<vmem>>, vector<32x96xf32>
    %cst_16 = arith.constant dense<0.000000e+00> : vector<8x96xf32>
    %33 = tpu.matmul %31, %32, %cst_16 {dimension_numbers = #tpu.dot_dimension_numbers<[1], [0], [0], [1], [0, 0, 1, 1], [], []>} : vector<8x32xf32>, vector<32x96xf32>, vector<8x96xf32> -> vector<8x96xf32>
    %c0_17 = arith.constant 0 : index
    %c0_18 = arith.constant 0 : index
    %34 = vector.load %arg6[%c0_17, %c0_18] : memref<1x96xf32, #tpu.memory_space<vmem>>, vector<1x96xf32>
    %35 = vector.shape_cast %34 : vector<1x96xf32> to vector<96xf32>
    %36 = vector.shape_cast %35 : vector<96xf32> to vector<1x96xf32>
    %37 = vector.broadcast %36 : vector<1x96xf32> to vector<8x96xf32>
    %38 = arith.addf %33, %37 : vector<8x96xf32>
    %39 = vector.extract_strided_slice %30 {offsets = [0, 0], sizes = [8, 8], strides = [1, 1]} : vector<8x96xf32> to vector<8x8xf32>
    %40 = vector.extract_strided_slice %30 {offsets = [0, 8], sizes = [8, 8], strides = [1, 1]} : vector<8x96xf32> to vector<8x8xf32>
    %41 = vector.extract_strided_slice %30 {offsets = [0, 16], sizes = [8, 8], strides = [1, 1]} : vector<8x96xf32> to vector<8x8xf32>
    %42 = vector.extract_strided_slice %30 {offsets = [0, 24], sizes = [8, 8], strides = [1, 1]} : vector<8x96xf32> to vector<8x8xf32>
    %43 = vector.shape_cast %39 : vector<8x8xf32> to vector<1x8x8xf32>
    %44 = vector.shape_cast %40 : vector<8x8xf32> to vector<1x8x8xf32>
    %45 = vector.shape_cast %41 : vector<8x8xf32> to vector<1x8x8xf32>
    %46 = vector.shape_cast %42 : vector<8x8xf32> to vector<1x8x8xf32>
    %47 = tpu.concatenate %43, %44, %45, %46 in 0 : vector<1x8x8xf32>, vector<1x8x8xf32>, vector<1x8x8xf32>, vector<1x8x8xf32> -> vector<4x8x8xf32>
    %48 = vector.extract_strided_slice %30 {offsets = [0, 32], sizes = [8, 8], strides = [1, 1]} : vector<8x96xf32> to vector<8x8xf32>
    %49 = vector.extract_strided_slice %30 {offsets = [0, 40], sizes = [8, 8], strides = [1, 1]} : vector<8x96xf32> to vector<8x8xf32>
    %50 = vector.extract_strided_slice %30 {offsets = [0, 48], sizes = [8, 8], strides = [1, 1]} : vector<8x96xf32> to vector<8x8xf32>
    %51 = vector.extract_strided_slice %30 {offsets = [0, 56], sizes = [8, 8], strides = [1, 1]} : vector<8x96xf32> to vector<8x8xf32>
    %52 = vector.shape_cast %48 : vector<8x8xf32> to vector<1x8x8xf32>
    %53 = vector.shape_cast %49 : vector<8x8xf32> to vector<1x8x8xf32>
    %54 = vector.shape_cast %50 : vector<8x8xf32> to vector<1x8x8xf32>
    %55 = vector.shape_cast %51 : vector<8x8xf32> to vector<1x8x8xf32>
    %56 = tpu.concatenate %52, %53, %54, %55 in 0 : vector<1x8x8xf32>, vector<1x8x8xf32>, vector<1x8x8xf32>, vector<1x8x8xf32> -> vector<4x8x8xf32>
    %57 = vector.extract_strided_slice %30 {offsets = [0, 64], sizes = [8, 8], strides = [1, 1]} : vector<8x96xf32> to vector<8x8xf32>
    %58 = vector.extract_strided_slice %30 {offsets = [0, 72], sizes = [8, 8], strides = [1, 1]} : vector<8x96xf32> to vector<8x8xf32>
    %59 = vector.extract_strided_slice %30 {offsets = [0, 80], sizes = [8, 8], strides = [1, 1]} : vector<8x96xf32> to vector<8x8xf32>
    %60 = vector.extract_strided_slice %30 {offsets = [0, 88], sizes = [8, 8], strides = [1, 1]} : vector<8x96xf32> to vector<8x8xf32>
    %61 = vector.shape_cast %57 : vector<8x8xf32> to vector<1x8x8xf32>
    %62 = vector.shape_cast %58 : vector<8x8xf32> to vector<1x8x8xf32>
    %63 = vector.shape_cast %59 : vector<8x8xf32> to vector<1x8x8xf32>
    %64 = vector.shape_cast %60 : vector<8x8xf32> to vector<1x8x8xf32>
    %65 = tpu.concatenate %61, %62, %63, %64 in 0 : vector<1x8x8xf32>, vector<1x8x8xf32>, vector<1x8x8xf32>, vector<1x8x8xf32> -> vector<4x8x8xf32>
    %66 = vector.extract_strided_slice %38 {offsets = [0, 0], sizes = [8, 8], strides = [1, 1]} : vector<8x96xf32> to vector<8x8xf32>
    %67 = vector.extract_strided_slice %38 {offsets = [0, 8], sizes = [8, 8], strides = [1, 1]} : vector<8x96xf32> to vector<8x8xf32>
    %68 = vector.extract_strided_slice %38 {offsets = [0, 16], sizes = [8, 8], strides = [1, 1]} : vector<8x96xf32> to vector<8x8xf32>
    %69 = vector.extract_strided_slice %38 {offsets = [0, 24], sizes = [8, 8], strides = [1, 1]} : vector<8x96xf32> to vector<8x8xf32>
    %70 = vector.shape_cast %66 : vector<8x8xf32> to vector<1x8x8xf32>
    %71 = vector.shape_cast %67 : vector<8x8xf32> to vector<1x8x8xf32>
    %72 = vector.shape_cast %68 : vector<8x8xf32> to vector<1x8x8xf32>
    %73 = vector.shape_cast %69 : vector<8x8xf32> to vector<1x8x8xf32>
    %74 = tpu.concatenate %70, %71, %72, %73 in 0 : vector<1x8x8xf32>, vector<1x8x8xf32>, vector<1x8x8xf32>, vector<1x8x8xf32> -> vector<4x8x8xf32>
    %75 = vector.extract_strided_slice %38 {offsets = [0, 32], sizes = [8, 8], strides = [1, 1]} : vector<8x96xf32> to vector<8x8xf32>
    %76 = vector.extract_strided_slice %38 {offsets = [0, 40], sizes = [8, 8], strides = [1, 1]} : vector<8x96xf32> to vector<8x8xf32>
    %77 = vector.extract_strided_slice %38 {offsets = [0, 48], sizes = [8, 8], strides = [1, 1]} : vector<8x96xf32> to vector<8x8xf32>
    %78 = vector.extract_strided_slice %38 {offsets = [0, 56], sizes = [8, 8], strides = [1, 1]} : vector<8x96xf32> to vector<8x8xf32>
    %79 = vector.shape_cast %75 : vector<8x8xf32> to vector<1x8x8xf32>
    %80 = vector.shape_cast %76 : vector<8x8xf32> to vector<1x8x8xf32>
    %81 = vector.shape_cast %77 : vector<8x8xf32> to vector<1x8x8xf32>
    %82 = vector.shape_cast %78 : vector<8x8xf32> to vector<1x8x8xf32>
    %83 = tpu.concatenate %79, %80, %81, %82 in 0 : vector<1x8x8xf32>, vector<1x8x8xf32>, vector<1x8x8xf32>, vector<1x8x8xf32> -> vector<4x8x8xf32>
    %84 = vector.extract_strided_slice %38 {offsets = [0, 64], sizes = [8, 8], strides = [1, 1]} : vector<8x96xf32> to vector<8x8xf32>
    %85 = vector.extract_strided_slice %38 {offsets = [0, 72], sizes = [8, 8], strides = [1, 1]} : vector<8x96xf32> to vector<8x8xf32>
    %86 = vector.extract_strided_slice %38 {offsets = [0, 80], sizes = [8, 8], strides = [1, 1]} : vector<8x96xf32> to vector<8x8xf32>
    %87 = vector.extract_strided_slice %38 {offsets = [0, 88], sizes = [8, 8], strides = [1, 1]} : vector<8x96xf32> to vector<8x8xf32>
    %88 = vector.shape_cast %84 : vector<8x8xf32> to vector<1x8x8xf32>
    %89 = vector.shape_cast %85 : vector<8x8xf32> to vector<1x8x8xf32>
    %90 = vector.shape_cast %86 : vector<8x8xf32> to vector<1x8x8xf32>
    %91 = vector.shape_cast %87 : vector<8x8xf32> to vector<1x8x8xf32>
    %92 = tpu.concatenate %88, %89, %90, %91 in 0 : vector<1x8x8xf32>, vector<1x8x8xf32>, vector<1x8x8xf32>, vector<1x8x8xf32> -> vector<4x8x8xf32>
    "tpu.trace_start"() <{level = 10 : i32, message = "hqd,hkd->hqk"}> : () -> ()
    %cst_19 = arith.constant dense<0.000000e+00> : vector<4x8x8xf32>
    %93 = tpu.matmul %83, %47, %cst_19 {dimension_numbers = #tpu.dot_dimension_numbers<[2], [2], [1], [1], [0, 0, 0, 1, 1, 1], [0], [0]>} : vector<4x8x8xf32>, vector<4x8x8xf32>, vector<4x8x8xf32> -> vector<4x8x8xf32>
    "tpu.trace_stop"() : () -> ()
    %cst_20 = arith.constant dense<0xFF800000> : vector<4x8xf32>
    %94 = vector.multi_reduction <maximumf>, %93, %cst_20 [2] : vector<4x8x8xf32> to vector<4x8xf32>
    %95 = vector.shape_cast %94 : vector<4x8xf32> to vector<4x8x1xf32>
    %96 = vector.broadcast %95 : vector<4x8x1xf32> to vector<4x8x8xf32>
    %97 = arith.subf %93, %96 : vector<4x8x8xf32>
    %98 = math.exp %97 : vector<4x8x8xf32>
    %cst_21 = arith.constant dense<0.000000e+00> : vector<4x8xf32>
    %99 = vector.multi_reduction <add>, %98, %cst_21 [2] : vector<4x8x8xf32> to vector<4x8xf32>
    %100 = vector.shape_cast %99 : vector<4x8xf32> to vector<4x8x1xf32>
    %101 = tpu.reciprocal %100 {approx = true} : vector<4x8x1xf32> -> vector<4x8x1xf32>
    %102 = vector.broadcast %101 : vector<4x8x1xf32> to vector<4x8x8xf32>
    %103 = arith.mulf %98, %102 : vector<4x8x8xf32>
    "tpu.trace_start"() <{level = 10 : i32, message = "hqd,hkd->hqk"}> : () -> ()
    %cst_22 = arith.constant dense<0.000000e+00> : vector<4x8x8xf32>
    %104 = tpu.matmul %56, %74, %cst_22 {dimension_numbers = #tpu.dot_dimension_numbers<[2], [2], [1], [1], [0, 0, 0, 1, 1, 1], [0], [0]>} : vector<4x8x8xf32>, vector<4x8x8xf32>, vector<4x8x8xf32> -> vector<4x8x8xf32>
    "tpu.trace_stop"() : () -> ()
    %cst_23 = arith.constant dense<0xFF800000> : vector<4x8xf32>
    %105 = vector.multi_reduction <maximumf>, %104, %cst_23 [2] : vector<4x8x8xf32> to vector<4x8xf32>
    %106 = vector.shape_cast %105 : vector<4x8xf32> to vector<4x8x1xf32>
    %107 = vector.broadcast %106 : vector<4x8x1xf32> to vector<4x8x8xf32>
    %108 = arith.subf %104, %107 : vector<4x8x8xf32>
    %109 = math.exp %108 : vector<4x8x8xf32>
    %cst_24 = arith.constant dense<0.000000e+00> : vector<4x8xf32>
    %110 = vector.multi_reduction <add>, %109, %cst_24 [2] : vector<4x8x8xf32> to vector<4x8xf32>
    %111 = vector.shape_cast %110 : vector<4x8xf32> to vector<4x8x1xf32>
    %112 = tpu.reciprocal %111 {approx = true} : vector<4x8x1xf32> -> vector<4x8x1xf32>
    %113 = vector.broadcast %112 : vector<4x8x1xf32> to vector<4x8x8xf32>
    %114 = arith.mulf %109, %113 : vector<4x8x8xf32>
    "tpu.trace_start"() <{level = 10 : i32, message = "hqk,hkd->hqd"}> : () -> ()
    %cst_25 = arith.constant dense<0.000000e+00> : vector<4x8x8xf32>
    %115 = tpu.matmul %103, %65, %cst_25 {dimension_numbers = #tpu.dot_dimension_numbers<[2], [1], [1], [2], [0, 0, 0, 1, 1, 2], [0], [0]>} : vector<4x8x8xf32>, vector<4x8x8xf32>, vector<4x8x8xf32> -> vector<4x8x8xf32>
    %cst_26 = arith.constant dense<0.000000e+00> : vector<4x8x8xf32>
    %116 = tpu.matmul %114, %92, %cst_26 {dimension_numbers = #tpu.dot_dimension_numbers<[2], [1], [1], [2], [0, 0, 0, 1, 1, 2], [0], [0]>} : vector<4x8x8xf32>, vector<4x8x8xf32>, vector<4x8x8xf32> -> vector<4x8x8xf32>
    "tpu.trace_stop"() : () -> ()
    %117 = tpu.concatenate %115, %116 in 1 : vector<4x8x8xf32>, vector<4x8x8xf32> -> vector<4x16x8xf32>
    %c0_27 = arith.constant 0 : index
    %c0_28 = arith.constant 0 : index
    %c0_29 = arith.constant 0 : index
    %118 = vector.load %arg7[%c0_27, %c0_28, %c0_29] : memref<4x8x32xf32, #tpu.memory_space<vmem>>, vector<4x8x32xf32>
    "tpu.trace_start"() <{level = 10 : i32, message = "htd,hdc->htc"}> : () -> ()
    %cst_30 = arith.constant dense<0.000000e+00> : vector<4x16x32xf32>
    %119 = tpu.matmul %117, %118, %cst_30 {dimension_numbers = #tpu.dot_dimension_numbers<[2], [1], [1], [2], [0, 0, 0, 1, 1, 2], [0], [0]>} : vector<4x16x8xf32>, vector<4x8x32xf32>, vector<4x16x32xf32> -> vector<4x16x32xf32>
    "tpu.trace_stop"() : () -> ()
    %cst_31 = arith.constant dense<0.000000e+00> : vector<16x32xf32>
    %120 = vector.multi_reduction <add>, %119, %cst_31 [0] : vector<4x16x32xf32> to vector<16x32xf32>
    %c0_32 = arith.constant 0 : index
    %c0_33 = arith.constant 0 : index
    %121 = vector.load %arg8[%c0_32, %c0_33] : memref<1x32xf32, #tpu.memory_space<vmem>>, vector<1x32xf32>
    %122 = vector.shape_cast %121 : vector<1x32xf32> to vector<32xf32>
    %123 = vector.shape_cast %122 : vector<32xf32> to vector<1x32xf32>
    %124 = vector.broadcast %123 : vector<1x32xf32> to vector<16x32xf32>
    %125 = arith.addf %120, %124 : vector<16x32xf32>
    %126 = arith.addf %4, %125 : vector<16x32xf32>
    %cst_34 = arith.constant dense<0.000000e+00> : vector<16xf32>
    %127 = vector.multi_reduction <add>, %126, %cst_34 [1] : vector<16x32xf32> to vector<16xf32>
    %128 = vector.shape_cast %127 : vector<16xf32> to vector<16x1xf32>
    %cst_35 = arith.constant 3.200000e+01 : f32
    %129 = vector.broadcast %cst_35 : f32 to vector<16x1xf32>
    %130 = arith.divf %128, %129 : vector<16x1xf32>
    %131 = vector.broadcast %130 : vector<16x1xf32> to vector<16x32xf32>
    %132 = arith.subf %126, %131 : vector<16x32xf32>
    %133 = arith.mulf %132, %132 : vector<16x32xf32>
    %cst_36 = arith.constant dense<0.000000e+00> : vector<16xf32>
    %134 = vector.multi_reduction <add>, %133, %cst_36 [1] : vector<16x32xf32> to vector<16xf32>
    %135 = vector.shape_cast %134 : vector<16xf32> to vector<16x1xf32>
    %cst_37 = arith.constant 3.200000e+01 : f32
    %136 = vector.broadcast %cst_37 : f32 to vector<16x1xf32>
    %137 = arith.divf %135, %136 : vector<16x1xf32>
    %138 = vector.broadcast %130 : vector<16x1xf32> to vector<16x32xf32>
    %139 = arith.subf %126, %138 : vector<16x32xf32>
    %cst_38 = arith.constant 9.99999974E-6 : f32
    %140 = vector.broadcast %cst_38 : f32 to vector<16x1xf32>
    %141 = arith.addf %137, %140 : vector<16x1xf32>
    %142 = math.rsqrt %141 : vector<16x1xf32>
    %143 = vector.broadcast %142 : vector<16x1xf32> to vector<16x32xf32>
    %144 = arith.mulf %139, %143 : vector<16x32xf32>
    %c0_39 = arith.constant 0 : index
    %c0_40 = arith.constant 0 : index
    %145 = vector.load %arg9[%c0_39, %c0_40] : memref<32x128xf32, #tpu.memory_space<vmem>>, vector<32x128xf32>
    %cst_41 = arith.constant dense<0.000000e+00> : vector<16x128xf32>
    %146 = tpu.matmul %144, %145, %cst_41 {dimension_numbers = #tpu.dot_dimension_numbers<[1], [0], [0], [1], [0, 0, 1, 1], [], []>} : vector<16x32xf32>, vector<32x128xf32>, vector<16x128xf32> -> vector<16x128xf32>
    %c0_42 = arith.constant 0 : index
    %c0_43 = arith.constant 0 : index
    %147 = vector.load %arg10[%c0_42, %c0_43] : memref<1x128xf32, #tpu.memory_space<vmem>>, vector<1x128xf32>
    %148 = vector.shape_cast %147 : vector<1x128xf32> to vector<128xf32>
    %149 = vector.shape_cast %148 : vector<128xf32> to vector<1x128xf32>
    %150 = vector.broadcast %149 : vector<1x128xf32> to vector<16x128xf32>
    %151 = arith.addf %146, %150 : vector<16x128xf32>
    %cst_44 = arith.constant 0.000000e+00 : f32
    %152 = vector.broadcast %cst_44 : f32 to vector<16x128xf32>
    %153 = arith.maximumf %151, %152 : vector<16x128xf32>
    %c0_45 = arith.constant 0 : index
    %c0_46 = arith.constant 0 : index
    %154 = vector.load %arg11[%c0_45, %c0_46] : memref<128x32xf32, #tpu.memory_space<vmem>>, vector<128x32xf32>
    %cst_47 = arith.constant dense<0.000000e+00> : vector<16x32xf32>
    %155 = tpu.matmul %153, %154, %cst_47 {dimension_numbers = #tpu.dot_dimension_numbers<[1], [0], [0], [1], [0, 0, 1, 1], [], []>} : vector<16x128xf32>, vector<128x32xf32>, vector<16x32xf32> -> vector<16x32xf32>
    %156 = arith.addf %126, %155 : vector<16x32xf32>
    %c0_48 = arith.constant 0 : index
    %c0_49 = arith.constant 0 : index
    %157 = vector.load %arg12[%c0_48, %c0_49] : memref<1x32xf32, #tpu.memory_space<vmem>>, vector<1x32xf32>
    %158 = vector.shape_cast %157 : vector<1x32xf32> to vector<32xf32>
    %159 = vector.shape_cast %158 : vector<32xf32> to vector<1x32xf32>
    %160 = vector.broadcast %159 : vector<1x32xf32> to vector<16x32xf32>
    %161 = arith.addf %156, %160 : vector<16x32xf32>
    %162 = vector.extract_strided_slice %161 {offsets = [0, 0], sizes = [8, 32], strides = [1, 1]} : vector<16x32xf32> to vector<8x32xf32>
    %c0_50 = arith.constant 0 : index
    %c0_51 = arith.constant 0 : index
    %c0_52 = arith.constant 0 : index
    %163 = vector.load %arg13[%c0_50, %c0_51, %c0_52] : memref<1x8x32xf32, #tpu.memory_space<vmem>>, vector<1x8x32xf32>
    %164 = vector.shape_cast %163 : vector<1x8x32xf32> to vector<8x32xf32>
    %165 = vector.shape_cast %162 : vector<8x32xf32> to vector<1x8x32xf32>
    tpu.vector_store %arg13[%c0_50, %c0_51, %c0_52], %165 {strides = array<i32>} : memref<1x8x32xf32, #tpu.memory_space<vmem>>, vector<1x8x32xf32>,
    %166 = vector.extract_strided_slice %161 {offsets = [8, 0], sizes = [8, 32], strides = [1, 1]} : vector<16x32xf32> to vector<8x32xf32>
    %c0_53 = arith.constant 0 : index
    %c0_54 = arith.constant 0 : index
    %c0_55 = arith.constant 0 : index
    %167 = vector.load %arg14[%c0_53, %c0_54, %c0_55] : memref<1x8x32xf32, #tpu.memory_space<vmem>>, vector<1x8x32xf32>
    %168 = vector.shape_cast %167 : vector<1x8x32xf32> to vector<8x32xf32>
    %169 = vector.shape_cast %166 : vector<8x32xf32> to vector<1x8x32xf32>
    tpu.vector_store %arg14[%c0_53, %c0_54, %c0_55], %169 {strides = array<i32>} : memref<1x8x32xf32, #tpu.memory_space<vmem>>, vector<1x8x32xf32>,
    return
  }
  func.func @transform_0(%arg0: i32) -> (i32, i32, i32) {
    %c0_i32 = arith.constant 0 : i32
    %c0_i32_0 = arith.constant 0 : i32
    %c0_i32_1 = arith.constant 0 : i32
    return %arg0, %c0_i32, %c0_i32_0 : i32, i32, i32
  }
  func.func @transform_1(%arg0: i32) -> (i32, i32, i32) {
    %c0_i32 = arith.constant 0 : i32
    %c0_i32_0 = arith.constant 0 : i32
    %c0_i32_1 = arith.constant 0 : i32
    return %arg0, %c0_i32, %c0_i32_0 : i32, i32, i32
  }
  func.func @transform_2(%arg0: i32) -> (i32, i32) {
    %c0_i32 = arith.constant 0 : i32
    %c0_i32_0 = arith.constant 0 : i32
    %c0_i32_1 = arith.constant 0 : i32
    return %c0_i32, %c0_i32_0 : i32, i32
  }
  func.func @transform_3(%arg0: i32) -> (i32, i32) {
    %c0_i32 = arith.constant 0 : i32
    %c0_i32_0 = arith.constant 0 : i32
    %c0_i32_1 = arith.constant 0 : i32
    return %c0_i32, %c0_i32_0 : i32, i32
  }
  func.func @transform_4(%arg0: i32) -> (i32, i32) {
    %c0_i32 = arith.constant 0 : i32
    %c0_i32_0 = arith.constant 0 : i32
    %c0_i32_1 = arith.constant 0 : i32
    return %c0_i32, %c0_i32_0 : i32, i32
  }
  func.func @transform_5(%arg0: i32) -> (i32, i32) {
    %c0_i32 = arith.constant 0 : i32
    %c0_i32_0 = arith.constant 0 : i32
    %c0_i32_1 = arith.constant 0 : i32
    return %c0_i32, %c0_i32_0 : i32, i32
  }
  func.func @transform_6(%arg0: i32) -> (i32, i32, i32) {
    %c0_i32 = arith.constant 0 : i32
    %c0_i32_0 = arith.constant 0 : i32
    %c0_i32_1 = arith.constant 0 : i32
    %c0_i32_2 = arith.constant 0 : i32
    return %c0_i32, %c0_i32_0, %c0_i32_1 : i32, i32, i32
  }
  func.func @transform_7(%arg0: i32) -> (i32, i32) {
    %c0_i32 = arith.constant 0 : i32
    %c0_i32_0 = arith.constant 0 : i32
    %c0_i32_1 = arith.constant 0 : i32
    return %c0_i32, %c0_i32_0 : i32, i32
  }
  func.func @transform_8(%arg0: i32) -> (i32, i32) {
    %c0_i32 = arith.constant 0 : i32
    %c0_i32_0 = arith.constant 0 : i32
    %c0_i32_1 = arith.constant 0 : i32
    return %c0_i32, %c0_i32_0 : i32, i32
  }
  func.func @transform_9(%arg0: i32) -> (i32, i32) {
    %c0_i32 = arith.constant 0 : i32
    %c0_i32_0 = arith.constant 0 : i32
    %c0_i32_1 = arith.constant 0 : i32
    return %c0_i32, %c0_i32_0 : i32, i32
  }
  func.func @transform_10(%arg0: i32) -> (i32, i32) {
    %c0_i32 = arith.constant 0 : i32
    %c0_i32_0 = arith.constant 0 : i32
    %c0_i32_1 = arith.constant 0 : i32
    return %c0_i32, %c0_i32_0 : i32, i32
  }
  func.func @transform_11(%arg0: i32) -> (i32, i32) {
    %c0_i32 = arith.constant 0 : i32
    %c0_i32_0 = arith.constant 0 : i32
    %c0_i32_1 = arith.constant 0 : i32
    return %c0_i32, %c0_i32_0 : i32, i32
  }
  func.func @transform_12(%arg0: i32) -> (i32, i32, i32) {
    %c0_i32 = arith.constant 0 : i32
    %c0_i32_0 = arith.constant 0 : i32
    %c0_i32_1 = arith.constant 0 : i32
    return %arg0, %c0_i32, %c0_i32_0 : i32, i32, i32
  }
  func.func @transform_13(%arg0: i32) -> (i32, i32, i32) {
    %c0_i32 = arith.constant 0 : i32
    %c0_i32_0 = arith.constant 0 : i32
    %c0_i32_1 = arith.constant 0 : i32
    return %arg0, %c0_i32, %c0_i32_0 : i32, i32, i32
  }
}

</mosaic_0001>

<llo_original>
// kernel: block_forward.1
$region0: #{block_forward.1}
  #allocation0 [shape = 'u32[]', space=smem, size = 0x4, offset = 0x4, fixed_abs, tag = 'smem constant byte address 0x4 - core index']
  #allocation1 [shape = 'u32[144,128]{1,0:T(1,128)}', space=vmem, size = 0x12000, scoped, tag = 'internal scratch']
  %s0 = inlined_call_operand.vmem [shape: f32[2,8,32], index: 0, kind: input, shape index: {}]
  %s1 = inlined_call_operand.vmem [shape: f32[2,8,32], index: 1, kind: input, shape index: {}]
  %s2 = inlined_call_operand.vmem [shape: f32[32,96], index: 2, kind: input, shape index: {}]
  %s3 = inlined_call_operand.vmem [shape: f32[1,96], index: 3, kind: input, shape index: {}]
  %s4 = inlined_call_operand.vmem [shape: f32[32,96], index: 4, kind: input, shape index: {}]
  %s5 = inlined_call_operand.vmem [shape: f32[1,96], index: 5, kind: input, shape index: {}]
  %s6 = inlined_call_operand.vmem [shape: f32[4,8,32], index: 6, kind: input, shape index: {}]
  %s7 = inlined_call_operand.vmem [shape: f32[1,32], index: 7, kind: input, shape index: {}]
  %s8 = inlined_call_operand.vmem [shape: f32[32,128], index: 8, kind: input, shape index: {}]
  %s9 = inlined_call_operand.vmem [shape: f32[1,128], index: 9, kind: input, shape index: {}]
  %s10 = inlined_call_operand.vmem [shape: f32[128,32], index: 10, kind: input, shape index: {}]
  %s11 = inlined_call_operand.vmem [shape: f32[1,32], index: 11, kind: input, shape index: {}]
  %s12 = inlined_call_operand.hbm [shape: f32[2,8,32], index: 12, kind: output, shape index: {0}]
  %s13 = inlined_call_operand.hbm [shape: f32[2,8,32], index: 13, kind: output, shape index: {1}]
  %14 = xla_tuple %s12, %s13
  %s15 = sld [smem:[#allocation0]]
  $region89: #{block_forward.1} parent=0
    _
  %s17 = ssub.s32 1, %s15
  %s18 = scalar_select 0, %s17, %s15
  $region1: #{block_forward.1} parent=0
    #allocation2 [shape = 'u8[8192]{0}', space=vmem, size = 0x2000, scoped, tag = 'output window, operand 0']
    #allocation3 [shape = 's32[2]{0}', space=sflag, size = 0x8, scoped, tag = 'scoped memory for block_forward.1']
    #allocation4 [shape = 'u8[8192]{0}', space=vmem, size = 0x2000, scoped, tag = 'output window, operand 1']
    #allocation5 [shape = 's32[2]{0}', space=sflag, size = 0x8, scoped, tag = 'scoped memory for block_forward.1']
    %19 = vsyncpa [#allocation3], 0
    %s20 = scalar_lea.sflag [#allocation3], 1
    %21 = vsyncpa %s20, 0
    %22 = vsyncpa [#allocation5], 0
    %s23 = scalar_lea.sflag [#allocation5], 1
    %24 = vsyncpa %s23, 0
    loop: start=0, step=1, limit=4
    $region2: #{block_forward.1} parent=1 // loop_pre_header
      _
    $region3: #{block_forward.1} parent=1 // loop_header
      %s26 = sphi 0, %s30
      %p27 = scmp.ge.s32.totalorder %s26, 4
      %s36 = sphi 0, %s38
      %s39 = sphi 0, %s36
      %s40 = sphi 0, %s39
      %s56 = sphi 0, %s40
      %s62 = sphi 0, %s64
      %s65 = sphi 0, %s62
      %s66 = sphi 0, %s65
      %s82 = sphi 0, %s66
      %s86 = sphi 0, %s86
      %s88 = sphi 0, %s86
      %s89 = sphi 0, %s88
      %s103 = sphi 0, %s89
      %s107 = sphi 0, %s107
      %s109 = sphi 0, %s107
      %s110 = sphi 0, %s109
      %s124 = sphi 0, %s110
      %s128 = sphi 0, %s128
      %s130 = sphi 0, %s128
      %s131 = sphi 0, %s130
      %s145 = sphi 0, %s131
      %s149 = sphi 0, %s149
      %s151 = sphi 0, %s149
      %s152 = sphi 0, %s151
      %s166 = sphi 0, %s152
      %s170 = sphi 0, %s170
      %s172 = sphi 0, %s170
      %s173 = sphi 0, %s172
      %s187 = sphi 0, %s173
      %s191 = sphi 0, %s191
      %s193 = sphi 0, %s191
      %s194 = sphi 0, %s193
      %s208 = sphi 0, %s194
      %s212 = sphi 0, %s212
      %s214 = sphi 0, %s212
      %s215 = sphi 0, %s214
      %s229 = sphi 0, %s215
      %s233 = sphi 0, %s233
      %s235 = sphi 0, %s233
      %s236 = sphi 0, %s235
      %s250 = sphi 0, %s236
      %s254 = sphi 0, %s254
      %s256 = sphi 0, %s254
      %s257 = sphi 0, %s256
      %s271 = sphi 0, %s257
      %s275 = sphi 0, %s275
      %s277 = sphi 0, %s275
      %s278 = sphi 0, %s277
      %s292 = sphi 0, %s278
      %s298 = sphi 0, %s300
      %s301 = sphi 0, %s298
      %s302 = sphi 0, %s301
      %s318 = sphi 0, %s302
      %s324 = sphi 0, %s326
      %s327 = sphi 0, %s324
      %s328 = sphi 0, %s327
      %s344 = sphi 0, %s328
    $region4: #{block_forward.1} parent=1 // loop_header_branch
      %29 = sbr.rel (%p27) target = $region8
    $region5: #{block_forward.1} parent=1 // loop_body
      %s31 = ssub.s32 %s26, 1
      %s32 = ssub.s32 %s26, 2
      %s33 = sadd.s32 %s26, 1
      %s34 = ssub.s32 %s26, %s33
      %p35 = scmp.eq.s32.totalorder %s34, 0
      %s37 = sadd.s32 %s36, 1
      %s38 = scalar_select %p35, %s36, %s37
      %p41 = pneg %p35
      %p42 = scmp.eq.s32.totalorder %s26, 1
      %p43 = por %p41, %p42
      %p44 = scmp.ne.s32.totalorder %s36, %s39
      %p45 = scmp.eq.s32.totalorder %s26, 0
      %p46 = por %p44, %p45
      %p47 = scmp.ne.s32.totalorder %s36, %s39
      %p48 = scmp.eq.s32.totalorder %s31, 1
      %p49 = por %p47, %p48
      %p50 = scmp.ne.s32.totalorder %s39, %s40
      %p51 = scmp.eq.s32.totalorder %s31, 0
      %p52 = por %p50, %p51
      %p53 = scmp.ne.s32.totalorder %s39, %s40
      %p54 = scmp.eq.s32.totalorder %s32, 1
      %p55 = por %p53, %p54
      %p57 = scmp.ne.s32.totalorder %s40, %s56
      %p58 = scmp.eq.s32.totalorder %s32, 0
      %p59 = por %p57, %p58
      %s60 = ssub.s32 %s26, %s33
      %p61 = scmp.eq.s32.totalorder %s60, 0
      %s63 = sadd.s32 %s62, 1
      %s64 = scalar_select %p61, %s62, %s63
      %p67 = pneg %p61
      %p68 = scmp.eq.s32.totalorder %s26, 1
      %p69 = por %p67, %p68
      %p70 = scmp.ne.s32.totalorder %s62, %s65
      %p71 = scmp.eq.s32.totalorder %s26, 0
      %p72 = por %p70, %p71
      %p73 = scmp.ne.s32.totalorder %s62, %s65
      %p74 = scmp.eq.s32.totalorder %s31, 1
      %p75 = por %p73, %p74
      %p76 = scmp.ne.s32.totalorder %s65, %s66
      %p77 = scmp.eq.s32.totalorder %s31, 0
      %p78 = por %p76, %p77
      %p79 = scmp.ne.s32.totalorder %s65, %s66
      %p80 = scmp.eq.s32.totalorder %s32, 1
      %p81 = por %p79, %p80
      %p83 = scmp.ne.s32.totalorder %s66, %s82
      %p84 = scmp.eq.s32.totalorder %s32, 0
      %p85 = por %p83, %p84
      %s87 = sadd.s32 %s86, 1
      %p90 = scmp.eq.s32.totalorder %s26, 1
      %p91 = scmp.ne.s32.totalorder %s86, %s88
      %p92 = scmp.eq.s32.totalorder %s26, 0
      %p93 = por %p91, %p92
      %p94 = scmp.ne.s32.totalorder %s86, %s88
      %p95 = scmp.eq.s32.totalorder %s31, 1
      %p96 = por %p94, %p95
      %p97 = scmp.ne.s32.totalorder %s88, %s89
      %p98 = scmp.eq.s32.totalorder %s31, 0
      %p99 = por %p97, %p98
      %p100 = scmp.ne.s32.totalorder %s88, %s89
      %p101 = scmp.eq.s32.totalorder %s32, 1
      %p102 = por %p100, %p101
      %p104 = scmp.ne.s32.totalorder %s89, %s103
      %p105 = scmp.eq.s32.totalorder %s32, 0
      %p106 = por %p104, %p105
      %s108 = sadd.s32 %s107, 1
      %p111 = scmp.eq.s32.totalorder %s26, 1
      %p112 = scmp.ne.s32.totalorder %s107, %s109
      %p113 = scmp.eq.s32.totalorder %s26, 0
      %p114 = por %p112, %p113
      %p115 = scmp.ne.s32.totalorder %s107, %s109
      %p116 = scmp.eq.s32.totalorder %s31, 1
      %p117 = por %p115, %p116
      %p118 = scmp.ne.s32.totalorder %s109, %s110
      %p119 = scmp.eq.s32.totalorder %s31, 0
      %p120 = por %p118, %p119
      %p121 = scmp.ne.s32.totalorder %s109, %s110
      %p122 = scmp.eq.s32.totalorder %s32, 1
      %p123 = por %p121, %p122
      %p125 = scmp.ne.s32.totalorder %s110, %s124
      %p126 = scmp.eq.s32.totalorder %s32, 0
      %p127 = por %p125, %p126
      %s129 = sadd.s32 %s128, 1
      %p132 = scmp.eq.s32.totalorder %s26, 1
      %p133 = scmp.ne.s32.totalorder %s128, %s130
      %p134 = scmp.eq.s32.totalorder %s26, 0
      %p135 = por %p133, %p134
      %p136 = scmp.ne.s32.totalorder %s128, %s130
      %p137 = scmp.eq.s32.totalorder %s31, 1
      %p138 = por %p136, %p137
      %p139 = scmp.ne.s32.totalorder %s130, %s131
      %p140 = scmp.eq.s32.totalorder %s31, 0
      %p141 = por %p139, %p140
      %p142 = scmp.ne.s32.totalorder %s130, %s131
      %p143 = scmp.eq.s32.totalorder %s32, 1
      %p144 = por %p142, %p143
      %p146 = scmp.ne.s32.totalorder %s131, %s145
      %p147 = scmp.eq.s32.totalorder %s32, 0
      %p148 = por %p146, %p147
      %s150 = sadd.s32 %s149, 1
      %p153 = scmp.eq.s32.totalorder %s26, 1
      %p154 = scmp.ne.s32.totalorder %s149, %s151
      %p155 = scmp.eq.s32.totalorder %s26, 0
      %p156 = por %p154, %p155
      %p157 = scmp.ne.s32.totalorder %s149, %s151
      %p158 = scmp.eq.s32.totalorder %s31, 1
      %p159 = por %p157, %p158
      %p160 = scmp.ne.s32.totalorder %s151, %s152
      %p161 = scmp.eq.s32.totalorder %s31, 0
      %p162 = por %p160, %p161
      %p163 = scmp.ne.s32.totalorder %s151, %s152
      %p164 = scmp.eq.s32.totalorder %s32, 1
      %p165 = por %p163, %p164
      %p167 = scmp.ne.s32.totalorder %s152, %s166
      %p168 = scmp.eq.s32.totalorder %s32, 0
      %p169 = por %p167, %p168
      %s171 = sadd.s32 %s170, 1
      %p174 = scmp.eq.s32.totalorder %s26, 1
      %p175 = scmp.ne.s32.totalorder %s170, %s172
      %p176 = scmp.eq.s32.totalorder %s26, 0
      %p177 = por %p175, %p176
      %p178 = scmp.ne.s32.totalorder %s170, %s172
      %p179 = scmp.eq.s32.totalorder %s31, 1
      %p180 = por %p178, %p179
      %p181 = scmp.ne.s32.totalorder %s172, %s173
      %p182 = scmp.eq.s32.totalorder %s31, 0
      %p183 = por %p181, %p182
      %p184 = scmp.ne.s32.totalorder %s172, %s173
      %p185 = scmp.eq.s32.totalorder %s32, 1
      %p186 = por %p184, %p185
      %p188 = scmp.ne.s32.totalorder %s173, %s187
      %p189 = scmp.eq.s32.totalorder %s32, 0
      %p190 = por %p188, %p189
      %s192 = sadd.s32 %s191, 1
      %p195 = scmp.eq.s32.totalorder %s26, 1
      %p196 = scmp.ne.s32.totalorder %s191, %s193
      %p197 = scmp.eq.s32.totalorder %s26, 0
      %p198 = por %p196, %p197
      %p199 = scmp.ne.s32.totalorder %s191, %s193
      %p200 = scmp.eq.s32.totalorder %s31, 1
      %p201 = por %p199, %p200
      %p202 = scmp.ne.s32.totalorder %s193, %s194
      %p203 = scmp.eq.s32.totalorder %s31, 0
      %p204 = por %p202, %p203
      %p205 = scmp.ne.s32.totalorder %s193, %s194
      %p206 = scmp.eq.s32.totalorder %s32, 1
      %p207 = por %p205, %p206
      %p209 = scmp.ne.s32.totalorder %s194, %s208
      %p210 = scmp.eq.s32.totalorder %s32, 0
      %p211 = por %p209, %p210
      %s213 = sadd.s32 %s212, 1
      %p216 = scmp.eq.s32.totalorder %s26, 1
      %p217 = scmp.ne.s32.totalorder %s212, %s214
      %p218 = scmp.eq.s32.totalorder %s26, 0
      %p219 = por %p217, %p218
      %p220 = scmp.ne.s32.totalorder %s212, %s214
      %p221 = scmp.eq.s32.totalorder %s31, 1
      %p222 = por %p220, %p221
      %p223 = scmp.ne.s32.totalorder %s214, %s215
      %p224 = scmp.eq.s32.totalorder %s31, 0
      %p225 = por %p223, %p224
      %p226 = scmp.ne.s32.totalorder %s214, %s215
      %p227 = scmp.eq.s32.totalorder %s32, 1
      %p228 = por %p226, %p227
      %p230 = scmp.ne.s32.totalorder %s215, %s229
      %p231 = scmp.eq.s32.totalorder %s32, 0
      %p232 = por %p230, %p231
      %s234 = sadd.s32 %s233, 1
      %p237 = scmp.eq.s32.totalorder %s26, 1
      %p238 = scmp.ne.s32.totalorder %s233, %s235
      %p239 = scmp.eq.s32.totalorder %s26, 0
      %p240 = por %p238, %p239
      %p241 = scmp.ne.s32.totalorder %s233, %s235
      %p242 = scmp.eq.s32.totalorder %s31, 1
      %p243 = por %p241, %p242
      %p244 = scmp.ne.s32.totalorder %s235, %s236
      %p245 = scmp.eq.s32.totalorder %s31, 0
      %p246 = por %p244, %p245
      %p247 = scmp.ne.s32.totalorder %s235, %s236
      %p248 = scmp.eq.s32.totalorder %s32, 1
      %p249 = por %p247, %p248
      %p251 = scmp.ne.s32.totalorder %s236, %s250
      %p252 = scmp.eq.s32.totalorder %s32, 0
      %p253 = por %p251, %p252
      %s255 = sadd.s32 %s254, 1
      %p258 = scmp.eq.s32.totalorder %s26, 1
      %p259 = scmp.ne.s32.totalorder %s254, %s256
      %p260 = scmp.eq.s32.totalorder %s26, 0
      %p261 = por %p259, %p260
      %p262 = scmp.ne.s32.totalorder %s254, %s256
      %p263 = scmp.eq.s32.totalorder %s31, 1
      %p264 = por %p262, %p263
      %p265 = scmp.ne.s32.totalorder %s256, %s257
      %p266 = scmp.eq.s32.totalorder %s31, 0
      %p267 = por %p265, %p266
      %p268 = scmp.ne.s32.totalorder %s256, %s257
      %p269 = scmp.eq.s32.totalorder %s32, 1
      %p270 = por %p268, %p269
      %p272 = scmp.ne.s32.totalorder %s257, %s271
      %p273 = scmp.eq.s32.totalorder %s32, 0
      %p274 = por %p272, %p273
      %s276 = sadd.s32 %s275, 1
      %p279 = scmp.eq.s32.totalorder %s26, 1
      %p280 = scmp.ne.s32.totalorder %s275, %s277
      %p281 = scmp.eq.s32.totalorder %s26, 0
      %p282 = por %p280, %p281
      %p283 = scmp.ne.s32.totalorder %s275, %s277
      %p284 = scmp.eq.s32.totalorder %s31, 1
      %p285 = por %p283, %p284
      %p286 = scmp.ne.s32.totalorder %s277, %s278
      %p287 = scmp.eq.s32.totalorder %s31, 0
      %p288 = por %p286, %p287
      %p289 = scmp.ne.s32.totalorder %s277, %s278
      %p290 = scmp.eq.s32.totalorder %s32, 1
      %p291 = por %p289, %p290
      %p293 = scmp.ne.s32.totalorder %s278, %s292
      %p294 = scmp.eq.s32.totalorder %s32, 0
      %p295 = por %p293, %p294
      %s296 = ssub.s32 %s26, %s33
      %p297 = scmp.eq.s32.totalorder %s296, 0
      %s299 = sadd.s32 %s298, 1
      %s300 = scalar_select %p297, %s298, %s299
      %p303 = pneg %p297
      %p304 = scmp.eq.s32.totalorder %s26, 1
      %p305 = por %p303, %p304
      %p306 = scmp.ne.s32.totalorder %s298, %s301
      %p307 = scmp.eq.s32.totalorder %s26, 0
      %p308 = por %p306, %p307
      %p309 = scmp.ne.s32.totalorder %s298, %s301
      %p310 = scmp.eq.s32.totalorder %s31, 1
      %p311 = por %p309, %p310
      %p312 = scmp.ne.s32.totalorder %s301, %s302
      %p313 = scmp.eq.s32.totalorder %s31, 0
      %p314 = por %p312, %p313
      %p315 = scmp.ne.s32.totalorder %s301, %s302
      %p316 = scmp.eq.s32.totalorder %s32, 1
      %p317 = por %p315, %p316
      %p319 = scmp.ne.s32.totalorder %s302, %s318
      %p320 = scmp.eq.s32.totalorder %s32, 0
      %p321 = por %p319, %p320
      %s322 = ssub.s32 %s26, %s33
      %p323 = scmp.eq.s32.totalorder %s322, 0
      %s325 = sadd.s32 %s324, 1
      %s326 = scalar_select %p323, %s324, %s325
      %p329 = pneg %p323
      %p330 = scmp.eq.s32.totalorder %s26, 1
      %p331 = por %p329, %p330
      %p332 = scmp.ne.s32.totalorder %s324, %s327
      %p333 = scmp.eq.s32.totalorder %s26, 0
      %p334 = por %p332, %p333
      %p335 = scmp.ne.s32.totalorder %s324, %s327
      %p336 = scmp.eq.s32.totalorder %s31, 1
      %p337 = por %p335, %p336
      %p338 = scmp.ne.s32.totalorder %s327, %s328
      %p339 = scmp.eq.s32.totalorder %s31, 0
      %p340 = por %p338, %p339
      %p341 = scmp.ne.s32.totalorder %s327, %s328
      %p342 = scmp.eq.s32.totalorder %s32, 1
      %p343 = por %p341, %p342
      %p345 = scmp.ne.s32.totalorder %s328, %s344
      %p346 = scmp.eq.s32.totalorder %s32, 0
      %p347 = por %p345, %p346
      %p348 = scmp.le.s32.totalorder 1, %s26
      %p349 = scmp.lt.s32.totalorder %s26, 3
      %p350 = pnand %p348, %p349
      %p351 = pneg %p350
      // Predicated region
      $region9: #{block_forward.1} parent=5 // pred_check
        _
      $region10: #{block_forward.1} parent=5 // pred_check_branch
        %353 = sbr.rel (%p350) target = $region12
      $region11: #{block_forward.1} parent=5 // pred_region
        %s354 = ssub.s32 %s26, 1
        // Predicated region
        $region13: #{block_forward.1} parent=11 // pred_check
          %p355 = pneg %p99
        $region14: #{block_forward.1} parent=11 // pred_check_branch
          %357 = sbr.rel (%p355) target = $region16
        $region15: #{block_forward.1} parent=11 // pred_region
          _
        $region16: #{block_forward.1} parent=11 // pred_fallthru
          _
        // Predicated region
        $region17: #{block_forward.1} parent=11 // pred_check
          %p358 = pneg %p120
        $region18: #{block_forward.1} parent=11 // pred_check_branch
          %360 = sbr.rel (%p358) target = $region20
        $region19: #{block_forward.1} parent=11 // pred_region
          _
        $region20: #{block_forward.1} parent=11 // pred_fallthru
          _
        // Predicated region
        $region21: #{block_forward.1} parent=11 // pred_check
          %p361 = pneg %p141
        $region22: #{block_forward.1} parent=11 // pred_check_branch
          %363 = sbr.rel (%p361) target = $region24
        $region23: #{block_forward.1} parent=11 // pred_region
          _
        $region24: #{block_forward.1} parent=11 // pred_fallthru
          _
        // Predicated region
        $region25: #{block_forward.1} parent=11 // pred_check
          %p364 = pneg %p162
        $region26: #{block_forward.1} parent=11 // pred_check_branch
          %366 = sbr.rel (%p364) target = $region28
        $region27: #{block_forward.1} parent=11 // pred_region
          _
        $region28: #{block_forward.1} parent=11 // pred_fallthru
          _
        // Predicated region
        $region29: #{block_forward.1} parent=11 // pred_check
          %p367 = pneg %p183
        $region30: #{block_forward.1} parent=11 // pred_check_branch
          %369 = sbr.rel (%p367) target = $region32
        $region31: #{block_forward.1} parent=11 // pred_region
          _
        $region32: #{block_forward.1} parent=11 // pred_fallthru
          _
        // Predicated region
        $region33: #{block_forward.1} parent=11 // pred_check
          %p370 = pneg %p204
        $region34: #{block_forward.1} parent=11 // pred_check_branch
          %372 = sbr.rel (%p370) target = $region36
        $region35: #{block_forward.1} parent=11 // pred_region
          _
        $region36: #{block_forward.1} parent=11 // pred_fallthru
          _
        // Predicated region
        $region37: #{block_forward.1} parent=11 // pred_check
          %p373 = pneg %p225
        $region38: #{block_forward.1} parent=11 // pred_check_branch
          %375 = sbr.rel (%p373) target = $region40
        $region39: #{block_forward.1} parent=11 // pred_region
          _
        $region40: #{block_forward.1} parent=11 // pred_fallthru
          _
        // Predicated region
        $region41: #{block_forward.1} parent=11 // pred_check
          %p376 = pneg %p246
        $region42: #{block_forward.1} parent=11 // pred_check_branch
          %378 = sbr.rel (%p376) target = $region44
        $region43: #{block_forward.1} parent=11 // pred_region
          _
        $region44: #{block_forward.1} parent=11 // pred_fallthru
          _
        // Predicated region
        $region45: #{block_forward.1} parent=11 // pred_check
          %p379 = pneg %p267
        $region46: #{block_forward.1} parent=11 // pred_check_branch
          %381 = sbr.rel (%p379) target = $region48
        $region47: #{block_forward.1} parent=11 // pred_region
          _
        $region48: #{block_forward.1} parent=11 // pred_fallthru
          _
        // Predicated region
        $region49: #{block_forward.1} parent=11 // pred_check
          %p382 = pneg %p288
        $region50: #{block_forward.1} parent=11 // pred_check_branch
          %384 = sbr.rel (%p382) target = $region52
        $region51: #{block_forward.1} parent=11 // pred_region
          _
        $region52: #{block_forward.1} parent=11 // pred_fallthru
          _
      $region12: #{block_forward.1} parent=5 // pred_fallthru
        _
      %p385 = scmp.lt.s32.totalorder %s26, 2
      // Predicated region
      $region53: #{block_forward.1} parent=5 // pred_check
        %p386 = pneg %p385
      $region54: #{block_forward.1} parent=5 // pred_check_branch
        %388 = sbr.rel (%p386) target = $region56
      $region55: #{block_forward.1} parent=5 // pred_region
        // Predicated region
        $region57: #{block_forward.1} parent=55 // pred_check
          %p389 = pneg %p46
        $region58: #{block_forward.1} parent=55 // pred_check_branch
          %391 = sbr.rel (%p389) target = $region60
        $region59: #{block_forward.1} parent=55 // pred_region
          %p392 = scmp.lt.s32.totalorder %s26, 1
          %s393 = scalar_select %p392, %s26, 1
          %s394 = smul.addr %s393, 8
          %s395 = scalar_lea.vmem %s0, %s394
        $region60: #{block_forward.1} parent=55 // pred_fallthru
          _
        // Predicated region
        $region61: #{block_forward.1} parent=55 // pred_check
          %p396 = pneg %p72
        $region62: #{block_forward.1} parent=55 // pred_check_branch
          %398 = sbr.rel (%p396) target = $region64
        $region63: #{block_forward.1} parent=55 // pred_region
          %p399 = scmp.lt.s32.totalorder %s26, 1
          %s400 = scalar_select %p399, %s26, 1
          %s401 = smul.addr %s400, 8
          %s402 = scalar_lea.vmem %s1, %s401
        $region64: #{block_forward.1} parent=55 // pred_fallthru
          _
      $region56: #{block_forward.1} parent=5 // pred_fallthru
        _
      %p403 = scmp.le.s32.totalorder 1, %s26
      %p404 = scmp.lt.s32.totalorder %s26, 3
      %p405 = pnand %p403, %p404
      %p406 = pneg %p405
      // Predicated region
      $region65: #{block_forward.1} parent=5 // pred_check
        _
      $region66: #{block_forward.1} parent=5 // pred_check_branch
        %408 = sbr.rel (%p405) target = $region68
      $region67: #{block_forward.1} parent=5 // pred_region
        %s409 = ssub.s32 %s26, 1
        %p410 = scmp.lt.s32.totalorder %s31, 1
        %s411 = scalar_select %p410, %s31, 1
        %s412 = smul.addr %s411, 8
        %s413 = scalar_lea.vmem %s0, %s412
        %p414 = pneg %p52
        %p415 = pneg %p49
        %p416 = scmp.lt.s32.totalorder %s31, 1
        %s417 = scalar_select %p416, %s31, 1
        %s418 = smul.addr %s417, 8
        %s419 = scalar_lea.vmem %s1, %s418
        %p420 = pneg %p78
        %p421 = pneg %p75
        %p422 = pneg %p99
        %p423 = pneg %p96
        %p424 = pneg %p120
        %p425 = pneg %p117
        %p426 = pneg %p141
        %p427 = pneg %p138
        %p428 = pneg %p162
        %p429 = pneg %p159
        %p430 = pneg %p183
        %p431 = pneg %p180
        %p432 = pneg %p204
        %p433 = pneg %p201
        %p434 = pneg %p225
        %p435 = pneg %p222
        %p436 = pneg %p246
        %p437 = pneg %p243
        %p438 = pneg %p267
        %p439 = pneg %p264
        %p440 = pneg %p288
        %p441 = pneg %p285
        %p442 = pneg %p314
        %p443 = pneg %p311
        %s444 = sand.u32 %s301, 1
        %s445 = scalar_lea.sflag [#allocation3], %s444
        %s446 = sand.u32 %s301, 1
        %s447 = smul.addr %s446, 8
        %s448 = scalar_lea.vmem [#allocation2], %s447
        %p449 = pneg %p340
        %p450 = pneg %p337
        %s451 = sand.u32 %s327, 1
        %s452 = scalar_lea.sflag [#allocation5], %s451
        %s453 = sand.u32 %s327, 1
        %s454 = smul.addr %s453, 8
        %s455 = scalar_lea.vmem [#allocation4], %s454
        %p456 = scmp.lt.s32.totalorder %s31, 1
        %s457 = scalar_select %p456, %s31, 1
        %s458 = smul.addr %s457, 8
        %s459 = scalar_lea.vmem %s0, %s458
        %p460 = scmp.lt.s32.totalorder %s31, 1
        %s461 = scalar_select %p460, %s31, 1
        %s462 = smul.addr %s461, 8
        %s463 = scalar_lea.vmem %s1, %s462
        %v464 = vld [vmem:[%s459] sm:$0xff]
        %v465 = vld [vmem:[%s463] sm:$0xff]
        %vm466 = vcmask 261120
        %v467 = vsel %vm466, %v464, 0.0
        %468 = vadd.xlane.f32.xlu0 %v467
        %v469 = vpop.xlane.xlu0 %468
        %v470 = vsel %vm466, %v465, 0.0
        %471 = vadd.xlane.f32.xlu0 %v470
        %v472 = vpop.xlane.xlu0 %471
        %v473 = vrcp.pop 32.0
        %v474 = vmul.f32 %v469, %v473
        %v475 = vmul.f32 %v472, %v473
        %v476 = vsub.f32 %v464, %v474
        %v477 = vsub.f32 %v465, %v475
        %v478 = vmul.f32 %v476, %v476
        %v479 = vmul.f32 %v477, %v477
        %v480 = vsel %vm466, %v478, 0.0
        %481 = vadd.xlane.f32.xlu0 %v480
        %v482 = vpop.xlane.xlu0 %481
        %v483 = vsel %vm466, %v479, 0.0
        %484 = vadd.xlane.f32.xlu0 %v483
        %v485 = vpop.xlane.xlu0 %484
        %v486 = vmul.f32 %v482, %v473
        %v487 = vmul.f32 %v485, %v473
        %v488 = vadd.f32 %v486, 1e-05
        %v489 = vadd.f32 %v487, 1e-05
        %v490 = vrsqrt.pop %v488
        %v491 = vrsqrt.pop %v489
        %v492 = vmul.f32 %v476, %v490
        %v493 = vmul.f32 %v477, %v491
        %v494 = vld [vmem:[%s2] sm:$0xff]
        %v495 = vld [vmem:[%s2 + $0x8] sm:$0xff]
        %v496 = vld [vmem:[%s2 + $0x10] sm:$0xff]
        %v497 = vld [vmem:[%s2 + $0x18] sm:$0xff]
        %v498 = vld [vmem:[%s3] sm:$0x1]
        %v500 = vlaneseq
        %v501 = vshrl.u32 %v500, 7
        %v502 = vsub.s32 0, %v501
        %v503 = vrot.slane %v498, %v502
        %v506 = vsel %vm466, %v492, 0
        %508 = vmatprep.subr.mxu0 0.0
        %509 = vmatpush1.msra.mxu0 %v494
        %510 = vmatprep.subr.mxu0 0.0
        %511 = vmatpush1.msra.mxu0 %v495
        %512 = vmatprep.subr.mxu0 0.0
        %513 = vmatpush1.msra.mxu0 %v496
        %514 = vmatprep.subr.mxu0 0.0
        %515 = vmatpush1.msra.mxu0 %v497
        %516 = vmatprep.subr.mxu0 0.0
        %517 = vmatpush1.msra.mxu0 0.0
        %518 = vmatprep.subr.mxu0 0.0
        %519 = vmatpush1.msra.mxu0 0.0
        %520 = vmatprep.subr.mxu0 0.0
        %521 = vmatpush1.msra.mxu0 0.0
        %522 = vmatprep.subr.mxu0 0.0
        %523 = vmatpush1.msra.mxu0 0.0
        %524 = vmatprep.subr.mxu0 0.0
        %525 = vmatpush1.msra.mxu0 0.0
        %526 = vmatprep.subr.mxu0 0.0
        %527 = vmatpush1.msra.mxu0 0.0
        %528 = vmatprep.subr.mxu0 0.0
        %529 = vmatpush1.msra.mxu0 0.0
        %530 = vmatprep.subr.mxu0 0.0
        %531 = vmatpush1.msra.mxu0 0.0
        %532 = vmatprep.subr.mxu0 0.0
        %533 = vmatpush1.msra.mxu0 0.0
        %534 = vmatprep.subr.mxu0 0.0
        %535 = vmatpush1.msra.mxu0 0.0
        %536 = vmatprep.subr.mxu0 0.0
        %537 = vmatpush1.msra.mxu0 0.0
        %538 = vmatprep.subr.mxu0 0.0
        %539 = vmatpush1.msra.mxu0 0.0
        %540 = vmatprep.subr.mxu0 0.0
        %541 = vmatpush1.msra.mxu0 0.0
        %542 = vmatprep.subr.mxu0 0.0
        %543 = vmatpush1.msra.mxu0 0.0
        %544 = vmatprep.subr.mxu0 0.0
        %545 = vmatpush1.msra.mxu0 0.0
        %546 = vmatprep.subr.mxu0 0.0
        %547 = vmatpush1.msra.mxu0 0.0
        %548 = vmatprep.subr.mxu0 0.0
        %549 = vmatpush1.msra.mxu0 0.0
        %550 = vmatprep.subr.mxu0 0.0
        %551 = vmatpush1.msra.mxu0 0.0
        %552 = vmatprep.subr.mxu0 0.0
        %553 = vmatpush1.msra.mxu0 0.0
        %554 = vmatprep.subr.mxu0 0.0
        %555 = vmatpush1.msra.mxu0 0.0
        %556 = vmatprep.subr.mxu0 0.0
        %557 = vmatpush1.msra.mxu0 0.0
        %558 = vmatprep.subr.mxu0 0.0
        %559 = vmatpush1.msra.mxu0 0.0
        %560 = vmatprep.subr.mxu0 0.0
        %561 = vmatpush1.msra.mxu0 0.0
        %562 = vmatprep.subr.mxu0 0.0
        %563 = vmatpush1.msra.mxu0 0.0
        %564 = vmatprep.subr.mxu0 0.0
        %565 = vmatpush1.msra.mxu0 0.0
        %566 = vmatprep.subr.mxu0 0.0
        %567 = vmatpush1.msra.mxu0 0.0
        %568 = vmatprep.subr.mxu0 0.0
        %569 = vmatpush1.msra.mxu0 0.0
        %570 = vmatprep.subr.mxu0 0.0
        %571 = vmatpush1.msra.mxu0 0.0
        %572 = vmatprep.mubr.f32.mxu0 0.0
        %573 = vmatmul.mubr.f32.gmra.mrb[0].mxu0 %v506
        %v574 = vpop.f32.mrb[0].mxu0
        %v575 = vadd.f32 %v503, %v574
        %v576 = vpop.f32.mrb[0].mxu0
        %577 = vdwg.mxu0
        %v578 = vld [vmem:[%s4] sm:$0xff]
        %v579 = vld [vmem:[%s4 + $0x8] sm:$0xff]
        %v580 = vld [vmem:[%s4 + $0x10] sm:$0xff]
        %v581 = vld [vmem:[%s4 + $0x18] sm:$0xff]
        %v582 = vld [vmem:[%s5] sm:$0x1]
        %v584 = vlaneseq
        %v585 = vshrl.u32 %v584, 7
        %v586 = vsub.s32 0, %v585
        %v587 = vrot.slane %v582, %v586
        %v590 = vsel %vm466, %v493, 0
        %592 = vmatprep.subr.mxu0 0.0
        %593 = vmatpush1.msra.mxu0 %v578
        %594 = vmatprep.subr.mxu0 0.0
        %595 = vmatpush1.msra.mxu0 %v579
        %596 = vmatprep.subr.mxu0 0.0
        %597 = vmatpush1.msra.mxu0 %v580
        %598 = vmatprep.subr.mxu0 0.0
        %599 = vmatpush1.msra.mxu0 %v581
        %600 = vmatprep.subr.mxu0 0.0
        %601 = vmatpush1.msra.mxu0 0.0
        %602 = vmatprep.subr.mxu0 0.0
        %603 = vmatpush1.msra.mxu0 0.0
        %604 = vmatprep.subr.mxu0 0.0
        %605 = vmatpush1.msra.mxu0 0.0
        %606 = vmatprep.subr.mxu0 0.0
        %607 = vmatpush1.msra.mxu0 0.0
        %608 = vmatprep.subr.mxu0 0.0
        %609 = vmatpush1.msra.mxu0 0.0
        %610 = vmatprep.subr.mxu0 0.0
        %611 = vmatpush1.msra.mxu0 0.0
        %612 = vmatprep.subr.mxu0 0.0
        %613 = vmatpush1.msra.mxu0 0.0
        %614 = vmatprep.subr.mxu0 0.0
        %615 = vmatpush1.msra.mxu0 0.0
        %616 = vmatprep.subr.mxu0 0.0
        %617 = vmatpush1.msra.mxu0 0.0
        %618 = vmatprep.subr.mxu0 0.0
        %619 = vmatpush1.msra.mxu0 0.0
        %620 = vmatprep.subr.mxu0 0.0
        %621 = vmatpush1.msra.mxu0 0.0
        %622 = vmatprep.subr.mxu0 0.0
        %623 = vmatpush1.msra.mxu0 0.0
        %624 = vmatprep.subr.mxu0 0.0
        %625 = vmatpush1.msra.mxu0 0.0
        %626 = vmatprep.subr.mxu0 0.0
        %627 = vmatpush1.msra.mxu0 0.0
        %628 = vmatprep.subr.mxu0 0.0
        %629 = vmatpush1.msra.mxu0 0.0
        %630 = vmatprep.subr.mxu0 0.0
        %631 = vmatpush1.msra.mxu0 0.0
        %632 = vmatprep.subr.mxu0 0.0
        %633 = vmatpush1.msra.mxu0 0.0
        %634 = vmatprep.subr.mxu0 0.0
        %635 = vmatpush1.msra.mxu0 0.0
        %636 = vmatprep.subr.mxu0 0.0
        %637 = vmatpush1.msra.mxu0 0.0
        %638 = vmatprep.subr.mxu0 0.0
        %639 = vmatpush1.msra.mxu0 0.0
        %640 = vmatprep.subr.mxu0 0.0
        %641 = vmatpush1.msra.mxu0 0.0
        %642 = vmatprep.subr.mxu0 0.0
        %643 = vmatpush1.msra.mxu0 0.0
        %644 = vmatprep.subr.mxu0 0.0
        %645 = vmatpush1.msra.mxu0 0.0
        %646 = vmatprep.subr.mxu0 0.0
        %647 = vmatpush1.msra.mxu0 0.0
        %648 = vmatprep.subr.mxu0 0.0
        %649 = vmatpush1.msra.mxu0 0.0
        %650 = vmatprep.subr.mxu0 0.0
        %651 = vmatpush1.msra.mxu0 0.0
        %652 = vmatprep.subr.mxu0 0.0
        %653 = vmatpush1.msra.mxu0 0.0
        %654 = vmatprep.subr.mxu0 0.0
        %655 = vmatpush1.msra.mxu0 0.0
        %656 = vmatprep.mubr.f32.mxu0 0.0
        %657 = vmatmul.mubr.f32.gmra.mrb[0].mxu0 %v590
        %v658 = vpop.f32.mrb[0].mxu0
        %v659 = vadd.f32 %v587, %v658
        %v660 = vpop.f32.mrb[0].mxu0
        %661 = vdwg.mxu0
        %663 = vrot.lane.b32.xlu0 %v575, 120
        %v664 = vpop.permute.xlu0 %663
        %665 = vrot.lane.b32.xlu0 %v575, 112
        %v666 = vpop.permute.xlu0 %665
        %667 = vrot.lane.b32.xlu0 %v575, 104
        %v668 = vpop.permute.xlu0 %667
        %670 = vrot.lane.b32.xlu0 %v659, 120
        %v671 = vpop.permute.xlu0 %670
        %672 = vrot.lane.b32.xlu0 %v659, 112
        %v673 = vpop.permute.xlu0 %672
        %674 = vrot.lane.b32.xlu0 %v659, 104
        %v675 = vpop.permute.xlu0 %674
        %676 = vrot.lane.b32.xlu0 %v659, 96
        %v677 = vpop.permute.xlu0 %676
        %vm678 = vcmask 64512
        %v679 = vsel %vm678, %v677, 0
        %v681 = vsel %vm678, %v575, 0
        %683 = vmatprep.subr.mxu0 0.0
        %684 = vmatpush1.xpose.msra.mxu0 %v681
        %685 = vmatprep.subr.mxu0 0.0
        %686 = vmatpush1.xpose.msra.mxu0 0.0
        %687 = vmatprep.subr.mxu0 0.0
        %688 = vmatpush1.xpose.msra.mxu0 0.0
        %689 = vmatprep.subr.mxu0 0.0
        %690 = vmatpush1.xpose.msra.mxu0 0.0
        %691 = vmatprep.subr.mxu0 0.0
        %692 = vmatpush1.xpose.msra.mxu0 0.0
        %693 = vmatprep.subr.mxu0 0.0
        %694 = vmatpush1.xpose.msra.mxu0 0.0
        %695 = vmatprep.subr.mxu0 0.0
        %696 = vmatpush1.xpose.msra.mxu0 0.0
        %697 = vmatprep.subr.mxu0 0.0
        %698 = vmatpush1.xpose.msra.mxu0 0.0
        %699 = vmatprep.subr.mxu0 0.0
        %700 = vmatpush1.xpose.msra.mxu0 0.0
        %701 = vmatprep.subr.mxu0 0.0
        %702 = vmatpush1.xpose.msra.mxu0 0.0
        %703 = vmatprep.subr.mxu0 0.0
        %704 = vmatpush1.xpose.msra.mxu0 0.0
        %705 = vmatprep.subr.mxu0 0.0
        %706 = vmatpush1.xpose.msra.mxu0 0.0
        %707 = vmatprep.subr.mxu0 0.0
        %708 = vmatpush1.xpose.msra.mxu0 0.0
        %709 = vmatprep.subr.mxu0 0.0
        %710 = vmatpush1.xpose.msra.mxu0 0.0
        %711 = vmatprep.subr.mxu0 0.0
        %712 = vmatpush1.xpose.msra.mxu0 0.0
        %713 = vmatprep.subr.mxu0 0.0
        %714 = vmatpush1.xpose.msra.mxu0 0.0
        %715 = vmatprep.subr.mxu0 0.0
        %716 = vmatpush1.xpose.msra.mxu0 0.0
        %717 = vmatprep.subr.mxu0 0.0
        %718 = vmatpush1.xpose.msra.mxu0 0.0
        %719 = vmatprep.subr.mxu0 0.0
        %720 = vmatpush1.xpose.msra.mxu0 0.0
        %721 = vmatprep.subr.mxu0 0.0
        %722 = vmatpush1.xpose.msra.mxu0 0.0
        %723 = vmatprep.subr.mxu0 0.0
        %724 = vmatpush1.xpose.msra.mxu0 0.0
        %725 = vmatprep.subr.mxu0 0.0
        %726 = vmatpush1.xpose.msra.mxu0 0.0
        %727 = vmatprep.subr.mxu0 0.0
        %728 = vmatpush1.xpose.msra.mxu0 0.0
        %729 = vmatprep.subr.mxu0 0.0
        %730 = vmatpush1.xpose.msra.mxu0 0.0
        %731 = vmatprep.subr.mxu0 0.0
        %732 = vmatpush1.xpose.msra.mxu0 0.0
        %733 = vmatprep.subr.mxu0 0.0
        %734 = vmatpush1.xpose.msra.mxu0 0.0
        %735 = vmatprep.subr.mxu0 0.0
        %736 = vmatpush1.xpose.msra.mxu0 0.0
        %737 = vmatprep.subr.mxu0 0.0
        %738 = vmatpush1.xpose.msra.mxu0 0.0
        %739 = vmatprep.subr.mxu0 0.0
        %740 = vmatpush1.xpose.msra.mxu0 0.0
        %741 = vmatprep.subr.mxu0 0.0
        %742 = vmatpush1.xpose.msra.mxu0 0.0
        %743 = vmatprep.subr.mxu0 0.0
        %744 = vmatpush1.xpose.msra.mxu0 0.0
        %745 = vmatprep.subr.mxu0 0.0
        %746 = vmatpush1.xpose.msra.mxu0 0.0
        %747 = vmatprep.mubr.f32.mxu0 0.0
        %748 = vmatmul.mubr.f32.gmra.mrb[0].mxu0 %v679
        %v749 = vpop.f32.mrb[0].mxu0
        %v750 = vadd.f32 0.0, %v749
        %v751 = vpop.f32.mrb[0].mxu0
        %752 = vdwg.mxu0
        %753 = vrot.lane.b32.xlu0 %v671, 96
        %v754 = vpop.permute.xlu0 %753
        %v755 = vsel %vm678, %v754, 0
        %v757 = vsel %vm678, %v664, 0
        %759 = vmatprep.subr.mxu0 0.0
        %760 = vmatpush1.xpose.msra.mxu0 %v757
        %761 = vmatprep.subr.mxu0 0.0
        %762 = vmatpush1.xpose.msra.mxu0 0.0
        %763 = vmatprep.subr.mxu0 0.0
        %764 = vmatpush1.xpose.msra.mxu0 0.0
        %765 = vmatprep.subr.mxu0 0.0
        %766 = vmatpush1.xpose.msra.mxu0 0.0
        %767 = vmatprep.subr.mxu0 0.0
        %768 = vmatpush1.xpose.msra.mxu0 0.0
        %769 = vmatprep.subr.mxu0 0.0
        %770 = vmatpush1.xpose.msra.mxu0 0.0
        %771 = vmatprep.subr.mxu0 0.0
        %772 = vmatpush1.xpose.msra.mxu0 0.0
        %773 = vmatprep.subr.mxu0 0.0
        %774 = vmatpush1.xpose.msra.mxu0 0.0
        %775 = vmatprep.subr.mxu0 0.0
        %776 = vmatpush1.xpose.msra.mxu0 0.0
        %777 = vmatprep.subr.mxu0 0.0
        %778 = vmatpush1.xpose.msra.mxu0 0.0
        %779 = vmatprep.subr.mxu0 0.0
        %780 = vmatpush1.xpose.msra.mxu0 0.0
        %781 = vmatprep.subr.mxu0 0.0
        %782 = vmatpush1.xpose.msra.mxu0 0.0
        %783 = vmatprep.subr.mxu0 0.0
        %784 = vmatpush1.xpose.msra.mxu0 0.0
        %785 = vmatprep.subr.mxu0 0.0
        %786 = vmatpush1.xpose.msra.mxu0 0.0
        %787 = vmatprep.subr.mxu0 0.0
        %788 = vmatpush1.xpose.msra.mxu0 0.0
        %789 = vmatprep.subr.mxu0 0.0
        %790 = vmatpush1.xpose.msra.mxu0 0.0
        %791 = vmatprep.subr.mxu0 0.0
        %792 = vmatpush1.xpose.msra.mxu0 0.0
        %793 = vmatprep.subr.mxu0 0.0
        %794 = vmatpush1.xpose.msra.mxu0 0.0
        %795 = vmatprep.subr.mxu0 0.0
        %796 = vmatpush1.xpose.msra.mxu0 0.0
        %797 = vmatprep.subr.mxu0 0.0
        %798 = vmatpush1.xpose.msra.mxu0 0.0
        %799 = vmatprep.subr.mxu0 0.0
        %800 = vmatpush1.xpose.msra.mxu0 0.0
        %801 = vmatprep.subr.mxu0 0.0
        %802 = vmatpush1.xpose.msra.mxu0 0.0
        %803 = vmatprep.subr.mxu0 0.0
        %804 = vmatpush1.xpose.msra.mxu0 0.0
        %805 = vmatprep.subr.mxu0 0.0
        %806 = vmatpush1.xpose.msra.mxu0 0.0
        %807 = vmatprep.subr.mxu0 0.0
        %808 = vmatpush1.xpose.msra.mxu0 0.0
        %809 = vmatprep.subr.mxu0 0.0
        %810 = vmatpush1.xpose.msra.mxu0 0.0
        %811 = vmatprep.subr.mxu0 0.0
        %812 = vmatpush1.xpose.msra.mxu0 0.0
        %813 = vmatprep.subr.mxu0 0.0
        %814 = vmatpush1.xpose.msra.mxu0 0.0
        %815 = vmatprep.subr.mxu0 0.0
        %816 = vmatpush1.xpose.msra.mxu0 0.0
        %817 = vmatprep.subr.mxu0 0.0
        %818 = vmatpush1.xpose.msra.mxu0 0.0
        %819 = vmatprep.subr.mxu0 0.0
        %820 = vmatpush1.xpose.msra.mxu0 0.0
        %821 = vmatprep.subr.mxu0 0.0
        %822 = vmatpush1.xpose.msra.mxu0 0.0
        %823 = vmatprep.mubr.f32.mxu0 0.0
        %824 = vmatmul.mubr.f32.gmra.mrb[0].mxu0 %v755
        %v825 = vpop.f32.mrb[0].mxu0
        %v826 = vadd.f32 0.0, %v825
        %v827 = vpop.f32.mrb[0].mxu0
        %828 = vdwg.mxu0
        %829 = vrot.lane.b32.xlu0 %v673, 96
        %v830 = vpop.permute.xlu0 %829
        %v831 = vsel %vm678, %v830, 0
        %v833 = vsel %vm678, %v666, 0
        %835 = vmatprep.subr.mxu0 0.0
        %836 = vmatpush1.xpose.msra.mxu0 %v833
        %837 = vmatprep.subr.mxu0 0.0
        %838 = vmatpush1.xpose.msra.mxu0 0.0
        %839 = vmatprep.subr.mxu0 0.0
        %840 = vmatpush1.xpose.msra.mxu0 0.0
        %841 = vmatprep.subr.mxu0 0.0
        %842 = vmatpush1.xpose.msra.mxu0 0.0
        %843 = vmatprep.subr.mxu0 0.0
        %844 = vmatpush1.xpose.msra.mxu0 0.0
        %845 = vmatprep.subr.mxu0 0.0
        %846 = vmatpush1.xpose.msra.mxu0 0.0
        %847 = vmatprep.subr.mxu0 0.0
        %848 = vmatpush1.xpose.msra.mxu0 0.0
        %849 = vmatprep.subr.mxu0 0.0
        %850 = vmatpush1.xpose.msra.mxu0 0.0
        %851 = vmatprep.subr.mxu0 0.0
        %852 = vmatpush1.xpose.msra.mxu0 0.0
        %853 = vmatprep.subr.mxu0 0.0
        %854 = vmatpush1.xpose.msra.mxu0 0.0
        %855 = vmatprep.subr.mxu0 0.0
        %856 = vmatpush1.xpose.msra.mxu0 0.0
        %857 = vmatprep.subr.mxu0 0.0
        %858 = vmatpush1.xpose.msra.mxu0 0.0
        %859 = vmatprep.subr.mxu0 0.0
        %860 = vmatpush1.xpose.msra.mxu0 0.0
        %861 = vmatprep.subr.mxu0 0.0
        %862 = vmatpush1.xpose.msra.mxu0 0.0
        %863 = vmatprep.subr.mxu0 0.0
        %864 = vmatpush1.xpose.msra.mxu0 0.0
        %865 = vmatprep.subr.mxu0 0.0
        %866 = vmatpush1.xpose.msra.mxu0 0.0
        %867 = vmatprep.subr.mxu0 0.0
        %868 = vmatpush1.xpose.msra.mxu0 0.0
        %869 = vmatprep.subr.mxu0 0.0
        %870 = vmatpush1.xpose.msra.mxu0 0.0
        %871 = vmatprep.subr.mxu0 0.0
        %872 = vmatpush1.xpose.msra.mxu0 0.0
        %873 = vmatprep.subr.mxu0 0.0
        %874 = vmatpush1.xpose.msra.mxu0 0.0
        %875 = vmatprep.subr.mxu0 0.0
        %876 = vmatpush1.xpose.msra.mxu0 0.0
        %877 = vmatprep.subr.mxu0 0.0
        %878 = vmatpush1.xpose.msra.mxu0 0.0
        %879 = vmatprep.subr.mxu0 0.0
        %880 = vmatpush1.xpose.msra.mxu0 0.0
        %881 = vmatprep.subr.mxu0 0.0
        %882 = vmatpush1.xpose.msra.mxu0 0.0
        %883 = vmatprep.subr.mxu0 0.0
        %884 = vmatpush1.xpose.msra.mxu0 0.0
        %885 = vmatprep.subr.mxu0 0.0
        %886 = vmatpush1.xpose.msra.mxu0 0.0
        %887 = vmatprep.subr.mxu0 0.0
        %888 = vmatpush1.xpose.msra.mxu0 0.0
        %889 = vmatprep.subr.mxu0 0.0
        %890 = vmatpush1.xpose.msra.mxu0 0.0
        %891 = vmatprep.subr.mxu0 0.0
        %892 = vmatpush1.xpose.msra.mxu0 0.0
        %893 = vmatprep.subr.mxu0 0.0
        %894 = vmatpush1.xpose.msra.mxu0 0.0
        %895 = vmatprep.subr.mxu0 0.0
        %896 = vmatpush1.xpose.msra.mxu0 0.0
        %897 = vmatprep.subr.mxu0 0.0
        %898 = vmatpush1.xpose.msra.mxu0 0.0
        %899 = vmatprep.mubr.f32.mxu0 0.0
        %900 = vmatmul.mubr.f32.gmra.mrb[0].mxu0 %v831
        %v901 = vpop.f32.mrb[0].mxu0
        %v902 = vadd.f32 0.0, %v901
        %v903 = vpop.f32.mrb[0].mxu0
        %904 = vdwg.mxu0
        %905 = vrot.lane.b32.xlu0 %v675, 96
        %v906 = vpop.permute.xlu0 %905
        %v907 = vsel %vm678, %v906, 0
        %v909 = vsel %vm678, %v668, 0
        %911 = vmatprep.subr.mxu0 0.0
        %912 = vmatpush1.xpose.msra.mxu0 %v909
        %913 = vmatprep.subr.mxu0 0.0
        %914 = vmatpush1.xpose.msra.mxu0 0.0
        %915 = vmatprep.subr.mxu0 0.0
        %916 = vmatpush1.xpose.msra.mxu0 0.0
        %917 = vmatprep.subr.mxu0 0.0
        %918 = vmatpush1.xpose.msra.mxu0 0.0
        %919 = vmatprep.subr.mxu0 0.0
        %920 = vmatpush1.xpose.msra.mxu0 0.0
        %921 = vmatprep.subr.mxu0 0.0
        %922 = vmatpush1.xpose.msra.mxu0 0.0
        %923 = vmatprep.subr.mxu0 0.0
        %924 = vmatpush1.xpose.msra.mxu0 0.0
        %925 = vmatprep.subr.mxu0 0.0
        %926 = vmatpush1.xpose.msra.mxu0 0.0
        %927 = vmatprep.subr.mxu0 0.0
        %928 = vmatpush1.xpose.msra.mxu0 0.0
        %929 = vmatprep.subr.mxu0 0.0
        %930 = vmatpush1.xpose.msra.mxu0 0.0
        %931 = vmatprep.subr.mxu0 0.0
        %932 = vmatpush1.xpose.msra.mxu0 0.0
        %933 = vmatprep.subr.mxu0 0.0
        %934 = vmatpush1.xpose.msra.mxu0 0.0
        %935 = vmatprep.subr.mxu0 0.0
        %936 = vmatpush1.xpose.msra.mxu0 0.0
        %937 = vmatprep.subr.mxu0 0.0
        %938 = vmatpush1.xpose.msra.mxu0 0.0
        %939 = vmatprep.subr.mxu0 0.0
        %940 = vmatpush1.xpose.msra.mxu0 0.0
        %941 = vmatprep.subr.mxu0 0.0
        %942 = vmatpush1.xpose.msra.mxu0 0.0
        %943 = vmatprep.subr.mxu0 0.0
        %944 = vmatpush1.xpose.msra.mxu0 0.0
        %945 = vmatprep.subr.mxu0 0.0
        %946 = vmatpush1.xpose.msra.mxu0 0.0
        %947 = vmatprep.subr.mxu0 0.0
        %948 = vmatpush1.xpose.msra.mxu0 0.0
        %949 = vmatprep.subr.mxu0 0.0
        %950 = vmatpush1.xpose.msra.mxu0 0.0
        %951 = vmatprep.subr.mxu0 0.0
        %952 = vmatpush1.xpose.msra.mxu0 0.0
        %953 = vmatprep.subr.mxu0 0.0
        %954 = vmatpush1.xpose.msra.mxu0 0.0
        %955 = vmatprep.subr.mxu0 0.0
        %956 = vmatpush1.xpose.msra.mxu0 0.0
        %957 = vmatprep.subr.mxu0 0.0
        %958 = vmatpush1.xpose.msra.mxu0 0.0
        %959 = vmatprep.subr.mxu0 0.0
        %960 = vmatpush1.xpose.msra.mxu0 0.0
        %961 = vmatprep.subr.mxu0 0.0
        %962 = vmatpush1.xpose.msra.mxu0 0.0
        %963 = vmatprep.subr.mxu0 0.0
        %964 = vmatpush1.xpose.msra.mxu0 0.0
        %965 = vmatprep.subr.mxu0 0.0
        %966 = vmatpush1.xpose.msra.mxu0 0.0
        %967 = vmatprep.subr.mxu0 0.0
        %968 = vmatpush1.xpose.msra.mxu0 0.0
        %969 = vmatprep.subr.mxu0 0.0
        %970 = vmatpush1.xpose.msra.mxu0 0.0
        %971 = vmatprep.subr.mxu0 0.0
        %972 = vmatpush1.xpose.msra.mxu0 0.0
        %973 = vmatprep.subr.mxu0 0.0
        %974 = vmatpush1.xpose.msra.mxu0 0.0
        %975 = vmatprep.mubr.f32.mxu0 0.0
        %976 = vmatmul.mubr.f32.gmra.mrb[0].mxu0 %v907
        %v977 = vpop.f32.mrb[0].mxu0
        %v978 = vadd.f32 0.0, %v977
        %v979 = vpop.f32.mrb[0].mxu0
        %980 = vdwg.mxu0
        %v981 = vsel %vm678, %v750, -inf
        %982 = vmax.xlane.f32.xlu0 %v981
        %v983 = vpop.xlane.xlu0 %982
        %v984 = vsel %vm678, %v826, -inf
        %985 = vmax.xlane.f32.xlu0 %v984
        %v986 = vpop.xlane.xlu0 %985
        %v987 = vsel %vm678, %v902, -inf
        %988 = vmax.xlane.f32.xlu0 %v987
        %v989 = vpop.xlane.xlu0 %988
        %v990 = vsel %vm678, %v978, -inf
        %991 = vmax.xlane.f32.xlu0 %v990
        %v992 = vpop.xlane.xlu0 %991
        %v993 = vsub.f32 %v750, %v983
        %v994 = vsub.f32 %v826, %v986
        %v995 = vsub.f32 %v902, %v989
        %v996 = vsub.f32 %v978, %v992
        %v997 = vmul.f32 %v993, 1.442695
        %v998 = vpow.pop %v997
        %v999 = vmul.f32 %v994, 1.442695
        %v1000 = vpow.pop %v999
        %v1001 = vmul.f32 %v995, 1.442695
        %v1002 = vpow.pop %v1001
        %v1003 = vmul.f32 %v996, 1.442695
        %v1004 = vpow.pop %v1003
        %v1005 = vsel %vm678, %v998, 0.0
        %1006 = vadd.xlane.f32.xlu0 %v1005
        %v1007 = vpop.xlane.xlu0 %1006
        %v1008 = vsel %vm678, %v1000, 0.0
        %1009 = vadd.xlane.f32.xlu0 %v1008
        %v1010 = vpop.xlane.xlu0 %1009
        %v1011 = vsel %vm678, %v1002, 0.0
        %1012 = vadd.xlane.f32.xlu0 %v1011
        %v1013 = vpop.xlane.xlu0 %1012
        %v1014 = vsel %vm678, %v1004, 0.0
        %1015 = vadd.xlane.f32.xlu0 %v1014
        %v1016 = vpop.xlane.xlu0 %1015
        %v1017 = vrcp.pop %v1007
        %v1018 = vrcp.pop %v1010
        %v1019 = vrcp.pop %v1013
        %v1020 = vrcp.pop %v1016
        %v1021 = vmul.f32 %v998, %v1017
        %v1022 = vmul.f32 %v1000, %v1018
        %v1023 = vmul.f32 %v1002, %v1019
        %v1024 = vmul.f32 %v1004, %v1020
        %1025 = vrot.lane.b32.xlu0 %v575, 96
        %v1026 = vpop.permute.xlu0 %1025
        %v1027 = vsel %vm678, %v1026, 0
        %v1029 = vsel %vm678, %v659, 0
        %1031 = vmatprep.subr.mxu0 0.0
        %1032 = vmatpush1.xpose.msra.mxu0 %v1029
        %1033 = vmatprep.subr.mxu0 0.0
        %1034 = vmatpush1.xpose.msra.mxu0 0.0
        %1035 = vmatprep.subr.mxu0 0.0
        %1036 = vmatpush1.xpose.msra.mxu0 0.0
        %1037 = vmatprep.subr.mxu0 0.0
        %1038 = vmatpush1.xpose.msra.mxu0 0.0
        %1039 = vmatprep.subr.mxu0 0.0
        %1040 = vmatpush1.xpose.msra.mxu0 0.0
        %1041 = vmatprep.subr.mxu0 0.0
        %1042 = vmatpush1.xpose.msra.mxu0 0.0
        %1043 = vmatprep.subr.mxu0 0.0
        %1044 = vmatpush1.xpose.msra.mxu0 0.0
        %1045 = vmatprep.subr.mxu0 0.0
        %1046 = vmatpush1.xpose.msra.mxu0 0.0
        %1047 = vmatprep.subr.mxu0 0.0
        %1048 = vmatpush1.xpose.msra.mxu0 0.0
        %1049 = vmatprep.subr.mxu0 0.0
        %1050 = vmatpush1.xpose.msra.mxu0 0.0
        %1051 = vmatprep.subr.mxu0 0.0
        %1052 = vmatpush1.xpose.msra.mxu0 0.0
        %1053 = vmatprep.subr.mxu0 0.0
        %1054 = vmatpush1.xpose.msra.mxu0 0.0
        %1055 = vmatprep.subr.mxu0 0.0
        %1056 = vmatpush1.xpose.msra.mxu0 0.0
        %1057 = vmatprep.subr.mxu0 0.0
        %1058 = vmatpush1.xpose.msra.mxu0 0.0
        %1059 = vmatprep.subr.mxu0 0.0
        %1060 = vmatpush1.xpose.msra.mxu0 0.0
        %1061 = vmatprep.subr.mxu0 0.0
        %1062 = vmatpush1.xpose.msra.mxu0 0.0
        %1063 = vmatprep.subr.mxu0 0.0
        %1064 = vmatpush1.xpose.msra.mxu0 0.0
        %1065 = vmatprep.subr.mxu0 0.0
        %1066 = vmatpush1.xpose.msra.mxu0 0.0
        %1067 = vmatprep.subr.mxu0 0.0
        %1068 = vmatpush1.xpose.msra.mxu0 0.0
        %1069 = vmatprep.subr.mxu0 0.0
        %1070 = vmatpush1.xpose.msra.mxu0 0.0
        %1071 = vmatprep.subr.mxu0 0.0
        %1072 = vmatpush1.xpose.msra.mxu0 0.0
        %1073 = vmatprep.subr.mxu0 0.0
        %1074 = vmatpush1.xpose.msra.mxu0 0.0
        %1075 = vmatprep.subr.mxu0 0.0
        %1076 = vmatpush1.xpose.msra.mxu0 0.0
        %1077 = vmatprep.subr.mxu0 0.0
        %1078 = vmatpush1.xpose.msra.mxu0 0.0
        %1079 = vmatprep.subr.mxu0 0.0
        %1080 = vmatpush1.xpose.msra.mxu0 0.0
        %1081 = vmatprep.subr.mxu0 0.0
        %1082 = vmatpush1.xpose.msra.mxu0 0.0
        %1083 = vmatprep.subr.mxu0 0.0
        %1084 = vmatpush1.xpose.msra.mxu0 0.0
        %1085 = vmatprep.subr.mxu0 0.0
        %1086 = vmatpush1.xpose.msra.mxu0 0.0
        %1087 = vmatprep.subr.mxu0 0.0
        %1088 = vmatpush1.xpose.msra.mxu0 0.0
        %1089 = vmatprep.subr.mxu0 0.0
        %1090 = vmatpush1.xpose.msra.mxu0 0.0
        %1091 = vmatprep.subr.mxu0 0.0
        %1092 = vmatpush1.xpose.msra.mxu0 0.0
        %1093 = vmatprep.subr.mxu0 0.0
        %1094 = vmatpush1.xpose.msra.mxu0 0.0
        %1095 = vmatprep.mubr.f32.mxu0 0.0
        %1096 = vmatmul.mubr.f32.gmra.mrb[0].mxu0 %v1027
        %v1097 = vpop.f32.mrb[0].mxu0
        %v1098 = vadd.f32 0.0, %v1097
        %v1099 = vpop.f32.mrb[0].mxu0
        %1100 = vdwg.mxu0
        %1101 = vrot.lane.b32.xlu0 %v664, 96
        %v1102 = vpop.permute.xlu0 %1101
        %v1103 = vsel %vm678, %v1102, 0
        %v1105 = vsel %vm678, %v671, 0
        %1107 = vmatprep.subr.mxu0 0.0
        %1108 = vmatpush1.xpose.msra.mxu0 %v1105
        %1109 = vmatprep.subr.mxu0 0.0
        %1110 = vmatpush1.xpose.msra.mxu0 0.0
        %1111 = vmatprep.subr.mxu0 0.0
        %1112 = vmatpush1.xpose.msra.mxu0 0.0
        %1113 = vmatprep.subr.mxu0 0.0
        %1114 = vmatpush1.xpose.msra.mxu0 0.0
        %1115 = vmatprep.subr.mxu0 0.0
        %1116 = vmatpush1.xpose.msra.mxu0 0.0
        %1117 = vmatprep.subr.mxu0 0.0
        %1118 = vmatpush1.xpose.msra.mxu0 0.0
        %1119 = vmatprep.subr.mxu0 0.0
        %1120 = vmatpush1.xpose.msra.mxu0 0.0
        %1121 = vmatprep.subr.mxu0 0.0
        %1122 = vmatpush1.xpose.msra.mxu0 0.0
        %1123 = vmatprep.subr.mxu0 0.0
        %1124 = vmatpush1.xpose.msra.mxu0 0.0
        %1125 = vmatprep.subr.mxu0 0.0
        %1126 = vmatpush1.xpose.msra.mxu0 0.0
        %1127 = vmatprep.subr.mxu0 0.0
        %1128 = vmatpush1.xpose.msra.mxu0 0.0
        %1129 = vmatprep.subr.mxu0 0.0
        %1130 = vmatpush1.xpose.msra.mxu0 0.0
        %1131 = vmatprep.subr.mxu0 0.0
        %1132 = vmatpush1.xpose.msra.mxu0 0.0
        %1133 = vmatprep.subr.mxu0 0.0
        %1134 = vmatpush1.xpose.msra.mxu0 0.0
        %1135 = vmatprep.subr.mxu0 0.0
        %1136 = vmatpush1.xpose.msra.mxu0 0.0
        %1137 = vmatprep.subr.mxu0 0.0
        %1138 = vmatpush1.xpose.msra.mxu0 0.0
        %1139 = vmatprep.subr.mxu0 0.0
        %1140 = vmatpush1.xpose.msra.mxu0 0.0
        %1141 = vmatprep.subr.mxu0 0.0
        %1142 = vmatpush1.xpose.msra.mxu0 0.0
        %1143 = vmatprep.subr.mxu0 0.0
        %1144 = vmatpush1.xpose.msra.mxu0 0.0
        %1145 = vmatprep.subr.mxu0 0.0
        %1146 = vmatpush1.xpose.msra.mxu0 0.0
        %1147 = vmatprep.subr.mxu0 0.0
        %1148 = vmatpush1.xpose.msra.mxu0 0.0
        %1149 = vmatprep.subr.mxu0 0.0
        %1150 = vmatpush1.xpose.msra.mxu0 0.0
        %1151 = vmatprep.subr.mxu0 0.0
        %1152 = vmatpush1.xpose.msra.mxu0 0.0
        %1153 = vmatprep.subr.mxu0 0.0
        %1154 = vmatpush1.xpose.msra.mxu0 0.0
        %1155 = vmatprep.subr.mxu0 0.0
        %1156 = vmatpush1.xpose.msra.mxu0 0.0
        %1157 = vmatprep.subr.mxu0 0.0
        %1158 = vmatpush1.xpose.msra.mxu0 0.0
        %1159 = vmatprep.subr.mxu0 0.0
        %1160 = vmatpush1.xpose.msra.mxu0 0.0
        %1161 = vmatprep.subr.mxu0 0.0
        %1162 = vmatpush1.xpose.msra.mxu0 0.0
        %1163 = vmatprep.subr.mxu0 0.0
        %1164 = vmatpush1.xpose.msra.mxu0 0.0
        %1165 = vmatprep.subr.mxu0 0.0
        %1166 = vmatpush1.xpose.msra.mxu0 0.0
        %1167 = vmatprep.subr.mxu0 0.0
        %1168 = vmatpush1.xpose.msra.mxu0 0.0
        %1169 = vmatprep.subr.mxu0 0.0
        %1170 = vmatpush1.xpose.msra.mxu0 0.0
        %1171 = vmatprep.mubr.f32.mxu0 0.0
        %1172 = vmatmul.mubr.f32.gmra.mrb[0].mxu0 %v1103
        %v1173 = vpop.f32.mrb[0].mxu0
        %v1174 = vadd.f32 0.0, %v1173
        %v1175 = vpop.f32.mrb[0].mxu0
        %1176 = vdwg.mxu0
        %1177 = vrot.lane.b32.xlu0 %v666, 96
        %v1178 = vpop.permute.xlu0 %1177
        %v1179 = vsel %vm678, %v1178, 0
        %v1181 = vsel %vm678, %v673, 0
        %1183 = vmatprep.subr.mxu0 0.0
        %1184 = vmatpush1.xpose.msra.mxu0 %v1181
        %1185 = vmatprep.subr.mxu0 0.0
        %1186 = vmatpush1.xpose.msra.mxu0 0.0
        %1187 = vmatprep.subr.mxu0 0.0
        %1188 = vmatpush1.xpose.msra.mxu0 0.0
        %1189 = vmatprep.subr.mxu0 0.0
        %1190 = vmatpush1.xpose.msra.mxu0 0.0
        %1191 = vmatprep.subr.mxu0 0.0
        %1192 = vmatpush1.xpose.msra.mxu0 0.0
        %1193 = vmatprep.subr.mxu0 0.0
        %1194 = vmatpush1.xpose.msra.mxu0 0.0
        %1195 = vmatprep.subr.mxu0 0.0
        %1196 = vmatpush1.xpose.msra.mxu0 0.0
        %1197 = vmatprep.subr.mxu0 0.0
        %1198 = vmatpush1.xpose.msra.mxu0 0.0
        %1199 = vmatprep.subr.mxu0 0.0
        %1200 = vmatpush1.xpose.msra.mxu0 0.0
        %1201 = vmatprep.subr.mxu0 0.0
        %1202 = vmatpush1.xpose.msra.mxu0 0.0
        %1203 = vmatprep.subr.mxu0 0.0
        %1204 = vmatpush1.xpose.msra.mxu0 0.0
        %1205 = vmatprep.subr.mxu0 0.0
        %1206 = vmatpush1.xpose.msra.mxu0 0.0
        %1207 = vmatprep.subr.mxu0 0.0
        %1208 = vmatpush1.xpose.msra.mxu0 0.0
        %1209 = vmatprep.subr.mxu0 0.0
        %1210 = vmatpush1.xpose.msra.mxu0 0.0
        %1211 = vmatprep.subr.mxu0 0.0
        %1212 = vmatpush1.xpose.msra.mxu0 0.0
        %1213 = vmatprep.subr.mxu0 0.0
        %1214 = vmatpush1.xpose.msra.mxu0 0.0
        %1215 = vmatprep.subr.mxu0 0.0
        %1216 = vmatpush1.xpose.msra.mxu0 0.0
        %1217 = vmatprep.subr.mxu0 0.0
        %1218 = vmatpush1.xpose.msra.mxu0 0.0
        %1219 = vmatprep.subr.mxu0 0.0
        %1220 = vmatpush1.xpose.msra.mxu0 0.0
        %1221 = vmatprep.subr.mxu0 0.0
        %1222 = vmatpush1.xpose.msra.mxu0 0.0
        %1223 = vmatprep.subr.mxu0 0.0
        %1224 = vmatpush1.xpose.msra.mxu0 0.0
        %1225 = vmatprep.subr.mxu0 0.0
        %1226 = vmatpush1.xpose.msra.mxu0 0.0
        %1227 = vmatprep.subr.mxu0 0.0
        %1228 = vmatpush1.xpose.msra.mxu0 0.0
        %1229 = vmatprep.subr.mxu0 0.0
        %1230 = vmatpush1.xpose.msra.mxu0 0.0
        %1231 = vmatprep.subr.mxu0 0.0
        %1232 = vmatpush1.xpose.msra.mxu0 0.0
        %1233 = vmatprep.subr.mxu0 0.0
        %1234 = vmatpush1.xpose.msra.mxu0 0.0
        %1235 = vmatprep.subr.mxu0 0.0
        %1236 = vmatpush1.xpose.msra.mxu0 0.0
        %1237 = vmatprep.subr.mxu0 0.0
        %1238 = vmatpush1.xpose.msra.mxu0 0.0
        %1239 = vmatprep.subr.mxu0 0.0
        %1240 = vmatpush1.xpose.msra.mxu0 0.0
        %1241 = vmatprep.subr.mxu0 0.0
        %1242 = vmatpush1.xpose.msra.mxu0 0.0
        %1243 = vmatprep.subr.mxu0 0.0
        %1244 = vmatpush1.xpose.msra.mxu0 0.0
        %1245 = vmatprep.subr.mxu0 0.0
        %1246 = vmatpush1.xpose.msra.mxu0 0.0
        %1247 = vmatprep.mubr.f32.mxu0 0.0
        %1248 = vmatmul.mubr.f32.gmra.mrb[0].mxu0 %v1179
        %v1249 = vpop.f32.mrb[0].mxu0
        %v1250 = vadd.f32 0.0, %v1249
        %v1251 = vpop.f32.mrb[0].mxu0
        %1252 = vdwg.mxu0
        %1253 = vrot.lane.b32.xlu0 %v668, 96
        %v1254 = vpop.permute.xlu0 %1253
        %v1255 = vsel %vm678, %v1254, 0
        %v1257 = vsel %vm678, %v675, 0
        %1259 = vmatprep.subr.mxu0 0.0
        %1260 = vmatpush1.xpose.msra.mxu0 %v1257
        %1261 = vmatprep.subr.mxu0 0.0
        %1262 = vmatpush1.xpose.msra.mxu0 0.0
        %1263 = vmatprep.subr.mxu0 0.0
        %1264 = vmatpush1.xpose.msra.mxu0 0.0
        %1265 = vmatprep.subr.mxu0 0.0
        %1266 = vmatpush1.xpose.msra.mxu0 0.0
        %1267 = vmatprep.subr.mxu0 0.0
        %1268 = vmatpush1.xpose.msra.mxu0 0.0
        %1269 = vmatprep.subr.mxu0 0.0
        %1270 = vmatpush1.xpose.msra.mxu0 0.0
        %1271 = vmatprep.subr.mxu0 0.0
        %1272 = vmatpush1.xpose.msra.mxu0 0.0
        %1273 = vmatprep.subr.mxu0 0.0
        %1274 = vmatpush1.xpose.msra.mxu0 0.0
        %1275 = vmatprep.subr.mxu0 0.0
        %1276 = vmatpush1.xpose.msra.mxu0 0.0
        %1277 = vmatprep.subr.mxu0 0.0
        %1278 = vmatpush1.xpose.msra.mxu0 0.0
        %1279 = vmatprep.subr.mxu0 0.0
        %1280 = vmatpush1.xpose.msra.mxu0 0.0
        %1281 = vmatprep.subr.mxu0 0.0
        %1282 = vmatpush1.xpose.msra.mxu0 0.0
        %1283 = vmatprep.subr.mxu0 0.0
        %1284 = vmatpush1.xpose.msra.mxu0 0.0
        %1285 = vmatprep.subr.mxu0 0.0
        %1286 = vmatpush1.xpose.msra.mxu0 0.0
        %1287 = vmatprep.subr.mxu0 0.0
        %1288 = vmatpush1.xpose.msra.mxu0 0.0
        %1289 = vmatprep.subr.mxu0 0.0
        %1290 = vmatpush1.xpose.msra.mxu0 0.0
        %1291 = vmatprep.subr.mxu0 0.0
        %1292 = vmatpush1.xpose.msra.mxu0 0.0
        %1293 = vmatprep.subr.mxu0 0.0
        %1294 = vmatpush1.xpose.msra.mxu0 0.0
        %1295 = vmatprep.subr.mxu0 0.0
        %1296 = vmatpush1.xpose.msra.mxu0 0.0
        %1297 = vmatprep.subr.mxu0 0.0
        %1298 = vmatpush1.xpose.msra.mxu0 0.0
        %1299 = vmatprep.subr.mxu0 0.0
        %1300 = vmatpush1.xpose.msra.mxu0 0.0
        %1301 = vmatprep.subr.mxu0 0.0
        %1302 = vmatpush1.xpose.msra.mxu0 0.0
        %1303 = vmatprep.subr.mxu0 0.0
        %1304 = vmatpush1.xpose.msra.mxu0 0.0
        %1305 = vmatprep.subr.mxu0 0.0
        %1306 = vmatpush1.xpose.msra.mxu0 0.0
        %1307 = vmatprep.subr.mxu0 0.0
        %1308 = vmatpush1.xpose.msra.mxu0 0.0
        %1309 = vmatprep.subr.mxu0 0.0
        %1310 = vmatpush1.xpose.msra.mxu0 0.0
        %1311 = vmatprep.subr.mxu0 0.0
        %1312 = vmatpush1.xpose.msra.mxu0 0.0
        %1313 = vmatprep.subr.mxu0 0.0
        %1314 = vmatpush1.xpose.msra.mxu0 0.0
        %1315 = vmatprep.subr.mxu0 0.0
        %1316 = vmatpush1.xpose.msra.mxu0 0.0
        %1317 = vmatprep.subr.mxu0 0.0
        %1318 = vmatpush1.xpose.msra.mxu0 0.0
        %1319 = vmatprep.subr.mxu0 0.0
        %1320 = vmatpush1.xpose.msra.mxu0 0.0
        %1321 = vmatprep.subr.mxu0 0.0
        %1322 = vmatpush1.xpose.msra.mxu0 0.0
        %1323 = vmatprep.mubr.f32.mxu0 0.0
        %1324 = vmatmul.mubr.f32.gmra.mrb[0].mxu0 %v1255
        %v1325 = vpop.f32.mrb[0].mxu0
        %v1326 = vadd.f32 0.0, %v1325
        %v1327 = vpop.f32.mrb[0].mxu0
        %1328 = vdwg.mxu0
        %v1329 = vsel %vm678, %v1098, -inf
        %1330 = vmax.xlane.f32.xlu0 %v1329
        %v1331 = vpop.xlane.xlu0 %1330
        %v1332 = vsel %vm678, %v1174, -inf
        %1333 = vmax.xlane.f32.xlu0 %v1332
        %v1334 = vpop.xlane.xlu0 %1333
        %v1335 = vsel %vm678, %v1250, -inf
        %1336 = vmax.xlane.f32.xlu0 %v1335
        %v1337 = vpop.xlane.xlu0 %1336
        %v1338 = vsel %vm678, %v1326, -inf
        %1339 = vmax.xlane.f32.xlu0 %v1338
        %v1340 = vpop.xlane.xlu0 %1339
        %v1341 = vsub.f32 %v1098, %v1331
        %v1342 = vsub.f32 %v1174, %v1334
        %v1343 = vsub.f32 %v1250, %v1337
        %v1344 = vsub.f32 %v1326, %v1340
        %v1345 = vmul.f32 %v1341, 1.442695
        %v1346 = vpow.pop %v1345
        %v1347 = vmul.f32 %v1342, 1.442695
        %v1348 = vpow.pop %v1347
        %v1349 = vmul.f32 %v1343, 1.442695
        %v1350 = vpow.pop %v1349
        %v1351 = vmul.f32 %v1344, 1.442695
        %v1352 = vpow.pop %v1351
        %v1353 = vsel %vm678, %v1346, 0.0
        %1354 = vadd.xlane.f32.xlu0 %v1353
        %v1355 = vpop.xlane.xlu0 %1354
        %v1356 = vsel %vm678, %v1348, 0.0
        %1357 = vadd.xlane.f32.xlu0 %v1356
        %v1358 = vpop.xlane.xlu0 %1357
        %v1359 = vsel %vm678, %v1350, 0.0
        %1360 = vadd.xlane.f32.xlu0 %v1359
        %v1361 = vpop.xlane.xlu0 %1360
        %v1362 = vsel %vm678, %v1352, 0.0
        %1363 = vadd.xlane.f32.xlu0 %v1362
        %v1364 = vpop.xlane.xlu0 %1363
        %v1365 = vrcp.pop %v1355
        %v1366 = vrcp.pop %v1358
        %v1367 = vrcp.pop %v1361
        %v1368 = vrcp.pop %v1364
        %v1369 = vmul.f32 %v1346, %v1365
        %v1370 = vmul.f32 %v1348, %v1366
        %v1371 = vmul.f32 %v1350, %v1367
        %v1372 = vmul.f32 %v1352, %v1368
        %1373 = vrot.lane.b32.xlu0 %v575, 64
        %v1374 = vpop.permute.xlu0 %1373
        %v1377 = vsel %vm678, %v1021, 0
        %1379 = vmatprep.subr.mxu0 0.0
        %1380 = vmatpush1.msra.mxu0 %v1374
        %1381 = vmatprep.subr.mxu0 0.0
        %1382 = vmatpush1.msra.mxu0 0.0
        %1383 = vmatprep.subr.mxu0 0.0
        %1384 = vmatpush1.msra.mxu0 0.0
        %1385 = vmatprep.subr.mxu0 0.0
        %1386 = vmatpush1.msra.mxu0 0.0
        %1387 = vmatprep.subr.mxu0 0.0
        %1388 = vmatpush1.msra.mxu0 0.0
        %1389 = vmatprep.subr.mxu0 0.0
        %1390 = vmatpush1.msra.mxu0 0.0
        %1391 = vmatprep.subr.mxu0 0.0
        %1392 = vmatpush1.msra.mxu0 0.0
        %1393 = vmatprep.subr.mxu0 0.0
        %1394 = vmatpush1.msra.mxu0 0.0
        %1395 = vmatprep.subr.mxu0 0.0
        %1396 = vmatpush1.msra.mxu0 0.0
        %1397 = vmatprep.subr.mxu0 0.0
        %1398 = vmatpush1.msra.mxu0 0.0
        %1399 = vmatprep.subr.mxu0 0.0
        %1400 = vmatpush1.msra.mxu0 0.0
        %1401 = vmatprep.subr.mxu0 0.0
        %1402 = vmatpush1.msra.mxu0 0.0
        %1403 = vmatprep.subr.mxu0 0.0
        %1404 = vmatpush1.msra.mxu0 0.0
        %1405 = vmatprep.subr.mxu0 0.0
        %1406 = vmatpush1.msra.mxu0 0.0
        %1407 = vmatprep.subr.mxu0 0.0
        %1408 = vmatpush1.msra.mxu0 0.0
        %1409 = vmatprep.subr.mxu0 0.0
        %1410 = vmatpush1.msra.mxu0 0.0
        %1411 = vmatprep.subr.mxu0 0.0
        %1412 = vmatpush1.msra.mxu0 0.0
        %1413 = vmatprep.subr.mxu0 0.0
        %1414 = vmatpush1.msra.mxu0 0.0
        %1415 = vmatprep.subr.mxu0 0.0
        %1416 = vmatpush1.msra.mxu0 0.0
        %1417 = vmatprep.subr.mxu0 0.0
        %1418 = vmatpush1.msra.mxu0 0.0
        %1419 = vmatprep.subr.mxu0 0.0
        %1420 = vmatpush1.msra.mxu0 0.0
        %1421 = vmatprep.subr.mxu0 0.0
        %1422 = vmatpush1.msra.mxu0 0.0
        %1423 = vmatprep.subr.mxu0 0.0
        %1424 = vmatpush1.msra.mxu0 0.0
        %1425 = vmatprep.subr.mxu0 0.0
        %1426 = vmatpush1.msra.mxu0 0.0
        %1427 = vmatprep.subr.mxu0 0.0
        %1428 = vmatpush1.msra.mxu0 0.0
        %1429 = vmatprep.subr.mxu0 0.0
        %1430 = vmatpush1.msra.mxu0 0.0
        %1431 = vmatprep.subr.mxu0 0.0
        %1432 = vmatpush1.msra.mxu0 0.0
        %1433 = vmatprep.subr.mxu0 0.0
        %1434 = vmatpush1.msra.mxu0 0.0
        %1435 = vmatprep.subr.mxu0 0.0
        %1436 = vmatpush1.msra.mxu0 0.0
        %1437 = vmatprep.subr.mxu0 0.0
        %1438 = vmatpush1.msra.mxu0 0.0
        %1439 = vmatprep.subr.mxu0 0.0
        %1440 = vmatpush1.msra.mxu0 0.0
        %1441 = vmatprep.subr.mxu0 0.0
        %1442 = vmatpush1.msra.mxu0 0.0
        %1443 = vmatprep.mubr.f32.mxu0 0.0
        %1444 = vmatmul.mubr.f32.gmra.mrb[0].mxu0 %v1377
        %v1445 = vpop.f32.mrb[0].mxu0
        %v1446 = vadd.f32 0.0, %v1445
        %v1447 = vpop.f32.mrb[0].mxu0
        %1448 = vdwg.mxu0
        %1449 = vrot.lane.b32.xlu0 %v664, 64
        %v1450 = vpop.permute.xlu0 %1449
        %v1453 = vsel %vm678, %v1022, 0
        %1455 = vmatprep.subr.mxu0 0.0
        %1456 = vmatpush1.msra.mxu0 %v1450
        %1457 = vmatprep.subr.mxu0 0.0
        %1458 = vmatpush1.msra.mxu0 0.0
        %1459 = vmatprep.subr.mxu0 0.0
        %1460 = vmatpush1.msra.mxu0 0.0
        %1461 = vmatprep.subr.mxu0 0.0
        %1462 = vmatpush1.msra.mxu0 0.0
        %1463 = vmatprep.subr.mxu0 0.0
        %1464 = vmatpush1.msra.mxu0 0.0
        %1465 = vmatprep.subr.mxu0 0.0
        %1466 = vmatpush1.msra.mxu0 0.0
        %1467 = vmatprep.subr.mxu0 0.0
        %1468 = vmatpush1.msra.mxu0 0.0
        %1469 = vmatprep.subr.mxu0 0.0
        %1470 = vmatpush1.msra.mxu0 0.0
        %1471 = vmatprep.subr.mxu0 0.0
        %1472 = vmatpush1.msra.mxu0 0.0
        %1473 = vmatprep.subr.mxu0 0.0
        %1474 = vmatpush1.msra.mxu0 0.0
        %1475 = vmatprep.subr.mxu0 0.0
        %1476 = vmatpush1.msra.mxu0 0.0
        %1477 = vmatprep.subr.mxu0 0.0
        %1478 = vmatpush1.msra.mxu0 0.0
        %1479 = vmatprep.subr.mxu0 0.0
        %1480 = vmatpush1.msra.mxu0 0.0
        %1481 = vmatprep.subr.mxu0 0.0
        %1482 = vmatpush1.msra.mxu0 0.0
        %1483 = vmatprep.subr.mxu0 0.0
        %1484 = vmatpush1.msra.mxu0 0.0
        %1485 = vmatprep.subr.mxu0 0.0
        %1486 = vmatpush1.msra.mxu0 0.0
        %1487 = vmatprep.subr.mxu0 0.0
        %1488 = vmatpush1.msra.mxu0 0.0
        %1489 = vmatprep.subr.mxu0 0.0
        %1490 = vmatpush1.msra.mxu0 0.0
        %1491 = vmatprep.subr.mxu0 0.0
        %1492 = vmatpush1.msra.mxu0 0.0
        %1493 = vmatprep.subr.mxu0 0.0
        %1494 = vmatpush1.msra.mxu0 0.0
        %1495 = vmatprep.subr.mxu0 0.0
        %1496 = vmatpush1.msra.mxu0 0.0
        %1497 = vmatprep.subr.mxu0 0.0
        %1498 = vmatpush1.msra.mxu0 0.0
        %1499 = vmatprep.subr.mxu0 0.0
        %1500 = vmatpush1.msra.mxu0 0.0
        %1501 = vmatprep.subr.mxu0 0.0
        %1502 = vmatpush1.msra.mxu0 0.0
        %1503 = vmatprep.subr.mxu0 0.0
        %1504 = vmatpush1.msra.mxu0 0.0
        %1505 = vmatprep.subr.mxu0 0.0
        %1506 = vmatpush1.msra.mxu0 0.0
        %1507 = vmatprep.subr.mxu0 0.0
        %1508 = vmatpush1.msra.mxu0 0.0
        %1509 = vmatprep.subr.mxu0 0.0
        %1510 = vmatpush1.msra.mxu0 0.0
        %1511 = vmatprep.subr.mxu0 0.0
        %1512 = vmatpush1.msra.mxu0 0.0
        %1513 = vmatprep.subr.mxu0 0.0
        %1514 = vmatpush1.msra.mxu0 0.0
        %1515 = vmatprep.subr.mxu0 0.0
        %1516 = vmatpush1.msra.mxu0 0.0
        %1517 = vmatprep.subr.mxu0 0.0
        %1518 = vmatpush1.msra.mxu0 0.0
        %1519 = vmatprep.mubr.f32.mxu0 0.0
        %1520 = vmatmul.mubr.f32.gmra.mrb[0].mxu0 %v1453
        %v1521 = vpop.f32.mrb[0].mxu0
        %v1522 = vadd.f32 0.0, %v1521
        %v1523 = vpop.f32.mrb[0].mxu0
        %1524 = vdwg.mxu0
        %1525 = vrot.lane.b32.xlu0 %v666, 64
        %v1526 = vpop.permute.xlu0 %1525
        %v1529 = vsel %vm678, %v1023, 0
        %1531 = vmatprep.subr.mxu0 0.0
        %1532 = vmatpush1.msra.mxu0 %v1526
        %1533 = vmatprep.subr.mxu0 0.0
        %1534 = vmatpush1.msra.mxu0 0.0
        %1535 = vmatprep.subr.mxu0 0.0
        %1536 = vmatpush1.msra.mxu0 0.0
        %1537 = vmatprep.subr.mxu0 0.0
        %1538 = vmatpush1.msra.mxu0 0.0
        %1539 = vmatprep.subr.mxu0 0.0
        %1540 = vmatpush1.msra.mxu0 0.0
        %1541 = vmatprep.subr.mxu0 0.0
        %1542 = vmatpush1.msra.mxu0 0.0
        %1543 = vmatprep.subr.mxu0 0.0
        %1544 = vmatpush1.msra.mxu0 0.0
        %1545 = vmatprep.subr.mxu0 0.0
        %1546 = vmatpush1.msra.mxu0 0.0
        %1547 = vmatprep.subr.mxu0 0.0
        %1548 = vmatpush1.msra.mxu0 0.0
        %1549 = vmatprep.subr.mxu0 0.0
        %1550 = vmatpush1.msra.mxu0 0.0
        %1551 = vmatprep.subr.mxu0 0.0
        %1552 = vmatpush1.msra.mxu0 0.0
        %1553 = vmatprep.subr.mxu0 0.0
        %1554 = vmatpush1.msra.mxu0 0.0
        %1555 = vmatprep.subr.mxu0 0.0
        %1556 = vmatpush1.msra.mxu0 0.0
        %1557 = vmatprep.subr.mxu0 0.0
        %1558 = vmatpush1.msra.mxu0 0.0
        %1559 = vmatprep.subr.mxu0 0.0
        %1560 = vmatpush1.msra.mxu0 0.0
        %1561 = vmatprep.subr.mxu0 0.0
        %1562 = vmatpush1.msra.mxu0 0.0
        %1563 = vmatprep.subr.mxu0 0.0
        %1564 = vmatpush1.msra.mxu0 0.0
        %1565 = vmatprep.subr.mxu0 0.0
        %1566 = vmatpush1.msra.mxu0 0.0
        %1567 = vmatprep.subr.mxu0 0.0
        %1568 = vmatpush1.msra.mxu0 0.0
        %1569 = vmatprep.subr.mxu0 0.0
        %1570 = vmatpush1.msra.mxu0 0.0
        %1571 = vmatprep.subr.mxu0 0.0
        %1572 = vmatpush1.msra.mxu0 0.0
        %1573 = vmatprep.subr.mxu0 0.0
        %1574 = vmatpush1.msra.mxu0 0.0
        %1575 = vmatprep.subr.mxu0 0.0
        %1576 = vmatpush1.msra.mxu0 0.0
        %1577 = vmatprep.subr.mxu0 0.0
        %1578 = vmatpush1.msra.mxu0 0.0
        %1579 = vmatprep.subr.mxu0 0.0
        %1580 = vmatpush1.msra.mxu0 0.0
        %1581 = vmatprep.subr.mxu0 0.0
        %1582 = vmatpush1.msra.mxu0 0.0
        %1583 = vmatprep.subr.mxu0 0.0
        %1584 = vmatpush1.msra.mxu0 0.0
        %1585 = vmatprep.subr.mxu0 0.0
        %1586 = vmatpush1.msra.mxu0 0.0
        %1587 = vmatprep.subr.mxu0 0.0
        %1588 = vmatpush1.msra.mxu0 0.0
        %1589 = vmatprep.subr.mxu0 0.0
        %1590 = vmatpush1.msra.mxu0 0.0
        %1591 = vmatprep.subr.mxu0 0.0
        %1592 = vmatpush1.msra.mxu0 0.0
        %1593 = vmatprep.subr.mxu0 0.0
        %1594 = vmatpush1.msra.mxu0 0.0
        %1595 = vmatprep.mubr.f32.mxu0 0.0
        %1596 = vmatmul.mubr.f32.gmra.mrb[0].mxu0 %v1529
        %v1597 = vpop.f32.mrb[0].mxu0
        %v1598 = vadd.f32 0.0, %v1597
        %v1599 = vpop.f32.mrb[0].mxu0
        %1600 = vdwg.mxu0
        %1601 = vrot.lane.b32.xlu0 %v668, 64
        %v1602 = vpop.permute.xlu0 %1601
        %v1605 = vsel %vm678, %v1024, 0
        %1607 = vmatprep.subr.mxu0 0.0
        %1608 = vmatpush1.msra.mxu0 %v1602
        %1609 = vmatprep.subr.mxu0 0.0
        %1610 = vmatpush1.msra.mxu0 0.0
        %1611 = vmatprep.subr.mxu0 0.0
        %1612 = vmatpush1.msra.mxu0 0.0
        %1613 = vmatprep.subr.mxu0 0.0
        %1614 = vmatpush1.msra.mxu0 0.0
        %1615 = vmatprep.subr.mxu0 0.0
        %1616 = vmatpush1.msra.mxu0 0.0
        %1617 = vmatprep.subr.mxu0 0.0
        %1618 = vmatpush1.msra.mxu0 0.0
        %1619 = vmatprep.subr.mxu0 0.0
        %1620 = vmatpush1.msra.mxu0 0.0
        %1621 = vmatprep.subr.mxu0 0.0
        %1622 = vmatpush1.msra.mxu0 0.0
        %1623 = vmatprep.subr.mxu0 0.0
        %1624 = vmatpush1.msra.mxu0 0.0
        %1625 = vmatprep.subr.mxu0 0.0
        %1626 = vmatpush1.msra.mxu0 0.0
        %1627 = vmatprep.subr.mxu0 0.0
        %1628 = vmatpush1.msra.mxu0 0.0
        %1629 = vmatprep.subr.mxu0 0.0
        %1630 = vmatpush1.msra.mxu0 0.0
        %1631 = vmatprep.subr.mxu0 0.0
        %1632 = vmatpush1.msra.mxu0 0.0
        %1633 = vmatprep.subr.mxu0 0.0
        %1634 = vmatpush1.msra.mxu0 0.0
        %1635 = vmatprep.subr.mxu0 0.0
        %1636 = vmatpush1.msra.mxu0 0.0
        %1637 = vmatprep.subr.mxu0 0.0
        %1638 = vmatpush1.msra.mxu0 0.0
        %1639 = vmatprep.subr.mxu0 0.0
        %1640 = vmatpush1.msra.mxu0 0.0
        %1641 = vmatprep.subr.mxu0 0.0
        %1642 = vmatpush1.msra.mxu0 0.0
        %1643 = vmatprep.subr.mxu0 0.0
        %1644 = vmatpush1.msra.mxu0 0.0
        %1645 = vmatprep.subr.mxu0 0.0
        %1646 = vmatpush1.msra.mxu0 0.0
        %1647 = vmatprep.subr.mxu0 0.0
        %1648 = vmatpush1.msra.mxu0 0.0
        %1649 = vmatprep.subr.mxu0 0.0
        %1650 = vmatpush1.msra.mxu0 0.0
        %1651 = vmatprep.subr.mxu0 0.0
        %1652 = vmatpush1.msra.mxu0 0.0
        %1653 = vmatprep.subr.mxu0 0.0
        %1654 = vmatpush1.msra.mxu0 0.0
        %1655 = vmatprep.subr.mxu0 0.0
        %1656 = vmatpush1.msra.mxu0 0.0
        %1657 = vmatprep.subr.mxu0 0.0
        %1658 = vmatpush1.msra.mxu0 0.0
        %1659 = vmatprep.subr.mxu0 0.0
        %1660 = vmatpush1.msra.mxu0 0.0
        %1661 = vmatprep.subr.mxu0 0.0
        %1662 = vmatpush1.msra.mxu0 0.0
        %1663 = vmatprep.subr.mxu0 0.0
        %1664 = vmatpush1.msra.mxu0 0.0
        %1665 = vmatprep.subr.mxu0 0.0
        %1666 = vmatpush1.msra.mxu0 0.0
        %1667 = vmatprep.subr.mxu0 0.0
        %1668 = vmatpush1.msra.mxu0 0.0
        %1669 = vmatprep.subr.mxu0 0.0
        %1670 = vmatpush1.msra.mxu0 0.0
        %1671 = vmatprep.mubr.f32.mxu0 0.0
        %1672 = vmatmul.mubr.f32.gmra.mrb[0].mxu0 %v1605
        %v1673 = vpop.f32.mrb[0].mxu0
        %v1674 = vadd.f32 0.0, %v1673
        %v1675 = vpop.f32.mrb[0].mxu0
        %1676 = vdwg.mxu0
        %1677 = vrot.lane.b32.xlu0 %v659, 64
        %v1678 = vpop.permute.xlu0 %1677
        %v1681 = vsel %vm678, %v1369, 0
        %1683 = vmatprep.subr.mxu0 0.0
        %1684 = vmatpush1.msra.mxu0 %v1678
        %1685 = vmatprep.subr.mxu0 0.0
        %1686 = vmatpush1.msra.mxu0 0.0
        %1687 = vmatprep.subr.mxu0 0.0
        %1688 = vmatpush1.msra.mxu0 0.0
        %1689 = vmatprep.subr.mxu0 0.0
        %1690 = vmatpush1.msra.mxu0 0.0
        %1691 = vmatprep.subr.mxu0 0.0
        %1692 = vmatpush1.msra.mxu0 0.0
        %1693 = vmatprep.subr.mxu0 0.0
        %1694 = vmatpush1.msra.mxu0 0.0
        %1695 = vmatprep.subr.mxu0 0.0
        %1696 = vmatpush1.msra.mxu0 0.0
        %1697 = vmatprep.subr.mxu0 0.0
        %1698 = vmatpush1.msra.mxu0 0.0
        %1699 = vmatprep.subr.mxu0 0.0
        %1700 = vmatpush1.msra.mxu0 0.0
        %1701 = vmatprep.subr.mxu0 0.0
        %1702 = vmatpush1.msra.mxu0 0.0
        %1703 = vmatprep.subr.mxu0 0.0
        %1704 = vmatpush1.msra.mxu0 0.0
        %1705 = vmatprep.subr.mxu0 0.0
        %1706 = vmatpush1.msra.mxu0 0.0
        %1707 = vmatprep.subr.mxu0 0.0
        %1708 = vmatpush1.msra.mxu0 0.0
        %1709 = vmatprep.subr.mxu0 0.0
        %1710 = vmatpush1.msra.mxu0 0.0
        %1711 = vmatprep.subr.mxu0 0.0
        %1712 = vmatpush1.msra.mxu0 0.0
        %1713 = vmatprep.subr.mxu0 0.0
        %1714 = vmatpush1.msra.mxu0 0.0
        %1715 = vmatprep.subr.mxu0 0.0
        %1716 = vmatpush1.msra.mxu0 0.0
        %1717 = vmatprep.subr.mxu0 0.0
        %1718 = vmatpush1.msra.mxu0 0.0
        %1719 = vmatprep.subr.mxu0 0.0
        %1720 = vmatpush1.msra.mxu0 0.0
        %1721 = vmatprep.subr.mxu0 0.0
        %1722 = vmatpush1.msra.mxu0 0.0
        %1723 = vmatprep.subr.mxu0 0.0
        %1724 = vmatpush1.msra.mxu0 0.0
        %1725 = vmatprep.subr.mxu0 0.0
        %1726 = vmatpush1.msra.mxu0 0.0
        %1727 = vmatprep.subr.mxu0 0.0
        %1728 = vmatpush1.msra.mxu0 0.0
        %1729 = vmatprep.subr.mxu0 0.0
        %1730 = vmatpush1.msra.mxu0 0.0
        %1731 = vmatprep.subr.mxu0 0.0
        %1732 = vmatpush1.msra.mxu0 0.0
        %1733 = vmatprep.subr.mxu0 0.0
        %1734 = vmatpush1.msra.mxu0 0.0
        %1735 = vmatprep.subr.mxu0 0.0
        %1736 = vmatpush1.msra.mxu0 0.0
        %1737 = vmatprep.subr.mxu0 0.0
        %1738 = vmatpush1.msra.mxu0 0.0
        %1739 = vmatprep.subr.mxu0 0.0
        %1740 = vmatpush1.msra.mxu0 0.0
        %1741 = vmatprep.subr.mxu0 0.0
        %1742 = vmatpush1.msra.mxu0 0.0
        %1743 = vmatprep.subr.mxu0 0.0
        %1744 = vmatpush1.msra.mxu0 0.0
        %1745 = vmatprep.subr.mxu0 0.0
        %1746 = vmatpush1.msra.mxu0 0.0
        %1747 = vmatprep.mubr.f32.mxu0 0.0
        %1748 = vmatmul.mubr.f32.gmra.mrb[0].mxu0 %v1681
        %v1749 = vpop.f32.mrb[0].mxu0
        %v1750 = vadd.f32 0.0, %v1749
        %v1751 = vpop.f32.mrb[0].mxu0
        %1752 = vdwg.mxu0
        %1753 = vrot.lane.b32.xlu0 %v671, 64
        %v1754 = vpop.permute.xlu0 %1753
        %v1757 = vsel %vm678, %v1370, 0
        %1759 = vmatprep.subr.mxu0 0.0
        %1760 = vmatpush1.msra.mxu0 %v1754
        %1761 = vmatprep.subr.mxu0 0.0
        %1762 = vmatpush1.msra.mxu0 0.0
        %1763 = vmatprep.subr.mxu0 0.0
        %1764 = vmatpush1.msra.mxu0 0.0
        %1765 = vmatprep.subr.mxu0 0.0
        %1766 = vmatpush1.msra.mxu0 0.0
        %1767 = vmatprep.subr.mxu0 0.0
        %1768 = vmatpush1.msra.mxu0 0.0
        %1769 = vmatprep.subr.mxu0 0.0
        %1770 = vmatpush1.msra.mxu0 0.0
        %1771 = vmatprep.subr.mxu0 0.0
        %1772 = vmatpush1.msra.mxu0 0.0
        %1773 = vmatprep.subr.mxu0 0.0
        %1774 = vmatpush1.msra.mxu0 0.0
        %1775 = vmatprep.subr.mxu0 0.0
        %1776 = vmatpush1.msra.mxu0 0.0
        %1777 = vmatprep.subr.mxu0 0.0
        %1778 = vmatpush1.msra.mxu0 0.0
        %1779 = vmatprep.subr.mxu0 0.0
        %1780 = vmatpush1.msra.mxu0 0.0
        %1781 = vmatprep.subr.mxu0 0.0
        %1782 = vmatpush1.msra.mxu0 0.0
        %1783 = vmatprep.subr.mxu0 0.0
        %1784 = vmatpush1.msra.mxu0 0.0
        %1785 = vmatprep.subr.mxu0 0.0
        %1786 = vmatpush1.msra.mxu0 0.0
        %1787 = vmatprep.subr.mxu0 0.0
        %1788 = vmatpush1.msra.mxu0 0.0
        %1789 = vmatprep.subr.mxu0 0.0
        %1790 = vmatpush1.msra.mxu0 0.0
        %1791 = vmatprep.subr.mxu0 0.0
        %1792 = vmatpush1.msra.mxu0 0.0
        %1793 = vmatprep.subr.mxu0 0.0
        %1794 = vmatpush1.msra.mxu0 0.0
        %1795 = vmatprep.subr.mxu0 0.0
        %1796 = vmatpush1.msra.mxu0 0.0
        %1797 = vmatprep.subr.mxu0 0.0
        %1798 = vmatpush1.msra.mxu0 0.0
        %1799 = vmatprep.subr.mxu0 0.0
        %1800 = vmatpush1.msra.mxu0 0.0
        %1801 = vmatprep.subr.mxu0 0.0
        %1802 = vmatpush1.msra.mxu0 0.0
        %1803 = vmatprep.subr.mxu0 0.0
        %1804 = vmatpush1.msra.mxu0 0.0
        %1805 = vmatprep.subr.mxu0 0.0
        %1806 = vmatpush1.msra.mxu0 0.0
        %1807 = vmatprep.subr.mxu0 0.0
        %1808 = vmatpush1.msra.mxu0 0.0
        %1809 = vmatprep.subr.mxu0 0.0
        %1810 = vmatpush1.msra.mxu0 0.0
        %1811 = vmatprep.subr.mxu0 0.0
        %1812 = vmatpush1.msra.mxu0 0.0
        %1813 = vmatprep.subr.mxu0 0.0
        %1814 = vmatpush1.msra.mxu0 0.0
        %1815 = vmatprep.subr.mxu0 0.0
        %1816 = vmatpush1.msra.mxu0 0.0
        %1817 = vmatprep.subr.mxu0 0.0
        %1818 = vmatpush1.msra.mxu0 0.0
        %1819 = vmatprep.subr.mxu0 0.0
        %1820 = vmatpush1.msra.mxu0 0.0
        %1821 = vmatprep.subr.mxu0 0.0
        %1822 = vmatpush1.msra.mxu0 0.0
        %1823 = vmatprep.mubr.f32.mxu0 0.0
        %1824 = vmatmul.mubr.f32.gmra.mrb[0].mxu0 %v1757
        %v1825 = vpop.f32.mrb[0].mxu0
        %v1826 = vadd.f32 0.0, %v1825
        %v1827 = vpop.f32.mrb[0].mxu0
        %1828 = vdwg.mxu0
        %1829 = vrot.lane.b32.xlu0 %v673, 64
        %v1830 = vpop.permute.xlu0 %1829
        %v1833 = vsel %vm678, %v1371, 0
        %1835 = vmatprep.subr.mxu0 0.0
        %1836 = vmatpush1.msra.mxu0 %v1830
        %1837 = vmatprep.subr.mxu0 0.0
        %1838 = vmatpush1.msra.mxu0 0.0
        %1839 = vmatprep.subr.mxu0 0.0
        %1840 = vmatpush1.msra.mxu0 0.0
        %1841 = vmatprep.subr.mxu0 0.0
        %1842 = vmatpush1.msra.mxu0 0.0
        %1843 = vmatprep.subr.mxu0 0.0
        %1844 = vmatpush1.msra.mxu0 0.0
        %1845 = vmatprep.subr.mxu0 0.0
        %1846 = vmatpush1.msra.mxu0 0.0
        %1847 = vmatprep.subr.mxu0 0.0
        %1848 = vmatpush1.msra.mxu0 0.0
        %1849 = vmatprep.subr.mxu0 0.0
        %1850 = vmatpush1.msra.mxu0 0.0
        %1851 = vmatprep.subr.mxu0 0.0
        %1852 = vmatpush1.msra.mxu0 0.0
        %1853 = vmatprep.subr.mxu0 0.0
        %1854 = vmatpush1.msra.mxu0 0.0
        %1855 = vmatprep.subr.mxu0 0.0
        %1856 = vmatpush1.msra.mxu0 0.0
        %1857 = vmatprep.subr.mxu0 0.0
        %1858 = vmatpush1.msra.mxu0 0.0
        %1859 = vmatprep.subr.mxu0 0.0
        %1860 = vmatpush1.msra.mxu0 0.0
        %1861 = vmatprep.subr.mxu0 0.0
        %1862 = vmatpush1.msra.mxu0 0.0
        %1863 = vmatprep.subr.mxu0 0.0
        %1864 = vmatpush1.msra.mxu0 0.0
        %1865 = vmatprep.subr.mxu0 0.0
        %1866 = vmatpush1.msra.mxu0 0.0
        %1867 = vmatprep.subr.mxu0 0.0
        %1868 = vmatpush1.msra.mxu0 0.0
        %1869 = vmatprep.subr.mxu0 0.0
        %1870 = vmatpush1.msra.mxu0 0.0
        %1871 = vmatprep.subr.mxu0 0.0
        %1872 = vmatpush1.msra.mxu0 0.0
        %1873 = vmatprep.subr.mxu0 0.0
        %1874 = vmatpush1.msra.mxu0 0.0
        %1875 = vmatprep.subr.mxu0 0.0
        %1876 = vmatpush1.msra.mxu0 0.0
        %1877 = vmatprep.subr.mxu0 0.0
        %1878 = vmatpush1.msra.mxu0 0.0
        %1879 = vmatprep.subr.mxu0 0.0
        %1880 = vmatpush1.msra.mxu0 0.0
        %1881 = vmatprep.subr.mxu0 0.0
        %1882 = vmatpush1.msra.mxu0 0.0
        %1883 = vmatprep.subr.mxu0 0.0
        %1884 = vmatpush1.msra.mxu0 0.0
        %1885 = vmatprep.subr.mxu0 0.0
        %1886 = vmatpush1.msra.mxu0 0.0
        %1887 = vmatprep.subr.mxu0 0.0
        %1888 = vmatpush1.msra.mxu0 0.0
        %1889 = vmatprep.subr.mxu0 0.0
        %1890 = vmatpush1.msra.mxu0 0.0
        %1891 = vmatprep.subr.mxu0 0.0
        %1892 = vmatpush1.msra.mxu0 0.0
        %1893 = vmatprep.subr.mxu0 0.0
        %1894 = vmatpush1.msra.mxu0 0.0
        %1895 = vmatprep.subr.mxu0 0.0
        %1896 = vmatpush1.msra.mxu0 0.0
        %1897 = vmatprep.subr.mxu0 0.0
        %1898 = vmatpush1.msra.mxu0 0.0
        %1899 = vmatprep.mubr.f32.mxu0 0.0
        %1900 = vmatmul.mubr.f32.gmra.mrb[0].mxu0 %v1833
        %v1901 = vpop.f32.mrb[0].mxu0
        %v1902 = vadd.f32 0.0, %v1901
        %v1903 = vpop.f32.mrb[0].mxu0
        %1904 = vdwg.mxu0
        %1905 = vrot.lane.b32.xlu0 %v675, 64
        %v1906 = vpop.permute.xlu0 %1905
        %v1909 = vsel %vm678, %v1372, 0
        %1911 = vmatprep.subr.mxu0 0.0
        %1912 = vmatpush1.msra.mxu0 %v1906
        %1913 = vmatprep.subr.mxu0 0.0
        %1914 = vmatpush1.msra.mxu0 0.0
        %1915 = vmatprep.subr.mxu0 0.0
        %1916 = vmatpush1.msra.mxu0 0.0
        %1917 = vmatprep.subr.mxu0 0.0
        %1918 = vmatpush1.msra.mxu0 0.0
        %1919 = vmatprep.subr.mxu0 0.0
        %1920 = vmatpush1.msra.mxu0 0.0
        %1921 = vmatprep.subr.mxu0 0.0
        %1922 = vmatpush1.msra.mxu0 0.0
        %1923 = vmatprep.subr.mxu0 0.0
        %1924 = vmatpush1.msra.mxu0 0.0
        %1925 = vmatprep.subr.mxu0 0.0
        %1926 = vmatpush1.msra.mxu0 0.0
        %1927 = vmatprep.subr.mxu0 0.0
        %1928 = vmatpush1.msra.mxu0 0.0
        %1929 = vmatprep.subr.mxu0 0.0
        %1930 = vmatpush1.msra.mxu0 0.0
        %1931 = vmatprep.subr.mxu0 0.0
        %1932 = vmatpush1.msra.mxu0 0.0
        %1933 = vmatprep.subr.mxu0 0.0
        %1934 = vmatpush1.msra.mxu0 0.0
        %1935 = vmatprep.subr.mxu0 0.0
        %1936 = vmatpush1.msra.mxu0 0.0
        %1937 = vmatprep.subr.mxu0 0.0
        %1938 = vmatpush1.msra.mxu0 0.0
        %1939 = vmatprep.subr.mxu0 0.0
        %1940 = vmatpush1.msra.mxu0 0.0
        %1941 = vmatprep.subr.mxu0 0.0
        %1942 = vmatpush1.msra.mxu0 0.0
        %1943 = vmatprep.subr.mxu0 0.0
        %1944 = vmatpush1.msra.mxu0 0.0
        %1945 = vmatprep.subr.mxu0 0.0
        %1946 = vmatpush1.msra.mxu0 0.0
        %1947 = vmatprep.subr.mxu0 0.0
        %1948 = vmatpush1.msra.mxu0 0.0
        %1949 = vmatprep.subr.mxu0 0.0
        %1950 = vmatpush1.msra.mxu0 0.0
        %1951 = vmatprep.subr.mxu0 0.0
        %1952 = vmatpush1.msra.mxu0 0.0
        %1953 = vmatprep.subr.mxu0 0.0
        %1954 = vmatpush1.msra.mxu0 0.0
        %1955 = vmatprep.subr.mxu0 0.0
        %1956 = vmatpush1.msra.mxu0 0.0
        %1957 = vmatprep.subr.mxu0 0.0
        %1958 = vmatpush1.msra.mxu0 0.0
        %1959 = vmatprep.subr.mxu0 0.0
        %1960 = vmatpush1.msra.mxu0 0.0
        %1961 = vmatprep.subr.mxu0 0.0
        %1962 = vmatpush1.msra.mxu0 0.0
        %1963 = vmatprep.subr.mxu0 0.0
        %1964 = vmatpush1.msra.mxu0 0.0
        %1965 = vmatprep.subr.mxu0 0.0
        %1966 = vmatpush1.msra.mxu0 0.0
        %1967 = vmatprep.subr.mxu0 0.0
        %1968 = vmatpush1.msra.mxu0 0.0
        %1969 = vmatprep.subr.mxu0 0.0
        %1970 = vmatpush1.msra.mxu0 0.0
        %1971 = vmatprep.subr.mxu0 0.0
        %1972 = vmatpush1.msra.mxu0 0.0
        %1973 = vmatprep.subr.mxu0 0.0
        %1974 = vmatpush1.msra.mxu0 0.0
        %1975 = vmatprep.mubr.f32.mxu0 0.0
        %1976 = vmatmul.mubr.f32.gmra.mrb[0].mxu0 %v1909
        %v1977 = vpop.f32.mrb[0].mxu0
        %v1978 = vadd.f32 0.0, %v1977
        %v1979 = vpop.f32.mrb[0].mxu0
        %1980 = vdwg.mxu0
        %v1981 = vld [vmem:[%s6] sm:$0xff]
        %v1982 = vld [vmem:[%s6 + $0x8] sm:$0xff]
        %v1983 = vld [vmem:[%s6 + $0x10] sm:$0xff]
        %v1984 = vld [vmem:[%s6 + $0x18] sm:$0xff]
        %v1986 = vsel %vm678, %v1446, 0
        %v1989 = vsel %vm678, %v1750, 0
        %1991 = vmatprep.subr.mxu0 0.0
        %1992 = vmatpush1.msra.mxu0 %v1981
        %1993 = vmatprep.subr.mxu0 0.0
        %1994 = vmatpush1.msra.mxu0 0.0
        %1995 = vmatprep.subr.mxu0 0.0
        %1996 = vmatpush1.msra.mxu0 0.0
        %1997 = vmatprep.subr.mxu0 0.0
        %1998 = vmatpush1.msra.mxu0 0.0
        %1999 = vmatprep.subr.mxu0 0.0
        %2000 = vmatpush1.msra.mxu0 0.0
        %2001 = vmatprep.subr.mxu0 0.0
        %2002 = vmatpush1.msra.mxu0 0.0
        %2003 = vmatprep.subr.mxu0 0.0
        %2004 = vmatpush1.msra.mxu0 0.0
        %2005 = vmatprep.subr.mxu0 0.0
        %2006 = vmatpush1.msra.mxu0 0.0
        %2007 = vmatprep.subr.mxu0 0.0
        %2008 = vmatpush1.msra.mxu0 0.0
        %2009 = vmatprep.subr.mxu0 0.0
        %2010 = vmatpush1.msra.mxu0 0.0
        %2011 = vmatprep.subr.mxu0 0.0
        %2012 = vmatpush1.msra.mxu0 0.0
        %2013 = vmatprep.subr.mxu0 0.0
        %2014 = vmatpush1.msra.mxu0 0.0
        %2015 = vmatprep.subr.mxu0 0.0
        %2016 = vmatpush1.msra.mxu0 0.0
        %2017 = vmatprep.subr.mxu0 0.0
        %2018 = vmatpush1.msra.mxu0 0.0
        %2019 = vmatprep.subr.mxu0 0.0
        %2020 = vmatpush1.msra.mxu0 0.0
        %2021 = vmatprep.subr.mxu0 0.0
        %2022 = vmatpush1.msra.mxu0 0.0
        %2023 = vmatprep.subr.mxu0 0.0
        %2024 = vmatpush1.msra.mxu0 0.0
        %2025 = vmatprep.subr.mxu0 0.0
        %2026 = vmatpush1.msra.mxu0 0.0
        %2027 = vmatprep.subr.mxu0 0.0
        %2028 = vmatpush1.msra.mxu0 0.0
        %2029 = vmatprep.subr.mxu0 0.0
        %2030 = vmatpush1.msra.mxu0 0.0
        %2031 = vmatprep.subr.mxu0 0.0
        %2032 = vmatpush1.msra.mxu0 0.0
        %2033 = vmatprep.subr.mxu0 0.0
        %2034 = vmatpush1.msra.mxu0 0.0
        %2035 = vmatprep.subr.mxu0 0.0
        %2036 = vmatpush1.msra.mxu0 0.0
        %2037 = vmatprep.subr.mxu0 0.0
        %2038 = vmatpush1.msra.mxu0 0.0
        %2039 = vmatprep.subr.mxu0 0.0
        %2040 = vmatpush1.msra.mxu0 0.0
        %2041 = vmatprep.subr.mxu0 0.0
        %2042 = vmatpush1.msra.mxu0 0.0
        %2043 = vmatprep.subr.mxu0 0.0
        %2044 = vmatpush1.msra.mxu0 0.0
        %2045 = vmatprep.subr.mxu0 0.0
        %2046 = vmatpush1.msra.mxu0 0.0
        %2047 = vmatprep.subr.mxu0 0.0
        %2048 = vmatpush1.msra.mxu0 0.0
        %2049 = vmatprep.subr.mxu0 0.0
        %2050 = vmatpush1.msra.mxu0 0.0
        %2051 = vmatprep.subr.mxu0 0.0
        %2052 = vmatpush1.msra.mxu0 0.0
        %2053 = vmatprep.subr.mxu0 0.0
        %2054 = vmatpush1.msra.mxu0 0.0
        %2055 = vmatprep.mubr.f32.mxu0 0.0
        %2056 = vmatmul.mubr.f32.gmra.mrb[0].mxu0 %v1986
        %v2057 = vpop.f32.mrb[0].mxu0
        %v2058 = vadd.f32 0.0, %v2057
        %v2059 = vpop.f32.mrb[0].mxu0
        %2060 = vmatprep.mubr.f32.mxu0 0.0
        %2061 = vmatmul.mubr.f32.gmra.mrb[0].mxu0 %v1989
        %v2062 = vpop.f32.mrb[0].mxu0
        %v2063 = vadd.f32 0.0, %v2062
        %v2064 = vpop.f32.mrb[0].mxu0
        %2065 = vdwg.mxu0
        %v2067 = vsel %vm678, %v1522, 0
        %v2070 = vsel %vm678, %v1826, 0
        %2072 = vmatprep.subr.mxu0 0.0
        %2073 = vmatpush1.msra.mxu0 %v1982
        %2074 = vmatprep.subr.mxu0 0.0
        %2075 = vmatpush1.msra.mxu0 0.0
        %2076 = vmatprep.subr.mxu0 0.0
        %2077 = vmatpush1.msra.mxu0 0.0
        %2078 = vmatprep.subr.mxu0 0.0
        %2079 = vmatpush1.msra.mxu0 0.0
        %2080 = vmatprep.subr.mxu0 0.0
        %2081 = vmatpush1.msra.mxu0 0.0
        %2082 = vmatprep.subr.mxu0 0.0
        %2083 = vmatpush1.msra.mxu0 0.0
        %2084 = vmatprep.subr.mxu0 0.0
        %2085 = vmatpush1.msra.mxu0 0.0
        %2086 = vmatprep.subr.mxu0 0.0
        %2087 = vmatpush1.msra.mxu0 0.0
        %2088 = vmatprep.subr.mxu0 0.0
        %2089 = vmatpush1.msra.mxu0 0.0
        %2090 = vmatprep.subr.mxu0 0.0
        %2091 = vmatpush1.msra.mxu0 0.0
        %2092 = vmatprep.subr.mxu0 0.0
        %2093 = vmatpush1.msra.mxu0 0.0
        %2094 = vmatprep.subr.mxu0 0.0
        %2095 = vmatpush1.msra.mxu0 0.0
        %2096 = vmatprep.subr.mxu0 0.0
        %2097 = vmatpush1.msra.mxu0 0.0
        %2098 = vmatprep.subr.mxu0 0.0
        %2099 = vmatpush1.msra.mxu0 0.0
        %2100 = vmatprep.subr.mxu0 0.0
        %2101 = vmatpush1.msra.mxu0 0.0
        %2102 = vmatprep.subr.mxu0 0.0
        %2103 = vmatpush1.msra.mxu0 0.0
        %2104 = vmatprep.subr.mxu0 0.0
        %2105 = vmatpush1.msra.mxu0 0.0
        %2106 = vmatprep.subr.mxu0 0.0
        %2107 = vmatpush1.msra.mxu0 0.0
        %2108 = vmatprep.subr.mxu0 0.0
        %2109 = vmatpush1.msra.mxu0 0.0
        %2110 = vmatprep.subr.mxu0 0.0
        %2111 = vmatpush1.msra.mxu0 0.0
        %2112 = vmatprep.subr.mxu0 0.0
        %2113 = vmatpush1.msra.mxu0 0.0
        %2114 = vmatprep.subr.mxu0 0.0
        %2115 = vmatpush1.msra.mxu0 0.0
        %2116 = vmatprep.subr.mxu0 0.0
        %2117 = vmatpush1.msra.mxu0 0.0
        %2118 = vmatprep.subr.mxu0 0.0
        %2119 = vmatpush1.msra.mxu0 0.0
        %2120 = vmatprep.subr.mxu0 0.0
        %2121 = vmatpush1.msra.mxu0 0.0
        %2122 = vmatprep.subr.mxu0 0.0
        %2123 = vmatpush1.msra.mxu0 0.0
        %2124 = vmatprep.subr.mxu0 0.0
        %2125 = vmatpush1.msra.mxu0 0.0
        %2126 = vmatprep.subr.mxu0 0.0
        %2127 = vmatpush1.msra.mxu0 0.0
        %2128 = vmatprep.subr.mxu0 0.0
        %2129 = vmatpush1.msra.mxu0 0.0
        %2130 = vmatprep.subr.mxu0 0.0
        %2131 = vmatpush1.msra.mxu0 0.0
        %2132 = vmatprep.subr.mxu0 0.0
        %2133 = vmatpush1.msra.mxu0 0.0
        %2134 = vmatprep.subr.mxu0 0.0
        %2135 = vmatpush1.msra.mxu0 0.0
        %2136 = vmatprep.mubr.f32.mxu0 0.0
        %2137 = vmatmul.mubr.f32.gmra.mrb[0].mxu0 %v2067
        %v2138 = vpop.f32.mrb[0].mxu0
        %v2139 = vadd.f32 0.0, %v2138
        %v2140 = vpop.f32.mrb[0].mxu0
        %2141 = vmatprep.mubr.f32.mxu0 0.0
        %2142 = vmatmul.mubr.f32.gmra.mrb[0].mxu0 %v2070
        %v2143 = vpop.f32.mrb[0].mxu0
        %v2144 = vadd.f32 0.0, %v2143
        %v2145 = vpop.f32.mrb[0].mxu0
        %2146 = vdwg.mxu0
        %v2148 = vsel %vm678, %v1598, 0
        %v2151 = vsel %vm678, %v1902, 0
        %2153 = vmatprep.subr.mxu0 0.0
        %2154 = vmatpush1.msra.mxu0 %v1983
        %2155 = vmatprep.subr.mxu0 0.0
        %2156 = vmatpush1.msra.mxu0 0.0
        %2157 = vmatprep.subr.mxu0 0.0
        %2158 = vmatpush1.msra.mxu0 0.0
        %2159 = vmatprep.subr.mxu0 0.0
        %2160 = vmatpush1.msra.mxu0 0.0
        %2161 = vmatprep.subr.mxu0 0.0
        %2162 = vmatpush1.msra.mxu0 0.0
        %2163 = vmatprep.subr.mxu0 0.0
        %2164 = vmatpush1.msra.mxu0 0.0
        %2165 = vmatprep.subr.mxu0 0.0
        %2166 = vmatpush1.msra.mxu0 0.0
        %2167 = vmatprep.subr.mxu0 0.0
        %2168 = vmatpush1.msra.mxu0 0.0
        %2169 = vmatprep.subr.mxu0 0.0
        %2170 = vmatpush1.msra.mxu0 0.0
        %2171 = vmatprep.subr.mxu0 0.0
        %2172 = vmatpush1.msra.mxu0 0.0
        %2173 = vmatprep.subr.mxu0 0.0
        %2174 = vmatpush1.msra.mxu0 0.0
        %2175 = vmatprep.subr.mxu0 0.0
        %2176 = vmatpush1.msra.mxu0 0.0
        %2177 = vmatprep.subr.mxu0 0.0
        %2178 = vmatpush1.msra.mxu0 0.0
        %2179 = vmatprep.subr.mxu0 0.0
        %2180 = vmatpush1.msra.mxu0 0.0
        %2181 = vmatprep.subr.mxu0 0.0
        %2182 = vmatpush1.msra.mxu0 0.0
        %2183 = vmatprep.subr.mxu0 0.0
        %2184 = vmatpush1.msra.mxu0 0.0
        %2185 = vmatprep.subr.mxu0 0.0
        %2186 = vmatpush1.msra.mxu0 0.0
        %2187 = vmatprep.subr.mxu0 0.0
        %2188 = vmatpush1.msra.mxu0 0.0
        %2189 = vmatprep.subr.mxu0 0.0
        %2190 = vmatpush1.msra.mxu0 0.0
        %2191 = vmatprep.subr.mxu0 0.0
        %2192 = vmatpush1.msra.mxu0 0.0
        %2193 = vmatprep.subr.mxu0 0.0
        %2194 = vmatpush1.msra.mxu0 0.0
        %2195 = vmatprep.subr.mxu0 0.0
        %2196 = vmatpush1.msra.mxu0 0.0
        %2197 = vmatprep.subr.mxu0 0.0
        %2198 = vmatpush1.msra.mxu0 0.0
        %2199 = vmatprep.subr.mxu0 0.0
        %2200 = vmatpush1.msra.mxu0 0.0
        %2201 = vmatprep.subr.mxu0 0.0
        %2202 = vmatpush1.msra.mxu0 0.0
        %2203 = vmatprep.subr.mxu0 0.0
        %2204 = vmatpush1.msra.mxu0 0.0
        %2205 = vmatprep.subr.mxu0 0.0
        %2206 = vmatpush1.msra.mxu0 0.0
        %2207 = vmatprep.subr.mxu0 0.0
        %2208 = vmatpush1.msra.mxu0 0.0
        %2209 = vmatprep.subr.mxu0 0.0
        %2210 = vmatpush1.msra.mxu0 0.0
        %2211 = vmatprep.subr.mxu0 0.0
        %2212 = vmatpush1.msra.mxu0 0.0
        %2213 = vmatprep.subr.mxu0 0.0
        %2214 = vmatpush1.msra.mxu0 0.0
        %2215 = vmatprep.subr.mxu0 0.0
        %2216 = vmatpush1.msra.mxu0 0.0
        %2217 = vmatprep.mubr.f32.mxu0 0.0
        %2218 = vmatmul.mubr.f32.gmra.mrb[0].mxu0 %v2148
        %v2219 = vpop.f32.mrb[0].mxu0
        %v2220 = vadd.f32 0.0, %v2219
        %v2221 = vpop.f32.mrb[0].mxu0
        %2222 = vmatprep.mubr.f32.mxu0 0.0
        %2223 = vmatmul.mubr.f32.gmra.mrb[0].mxu0 %v2151
        %v2224 = vpop.f32.mrb[0].mxu0
        %v2225 = vadd.f32 0.0, %v2224
        %v2226 = vpop.f32.mrb[0].mxu0
        %2227 = vdwg.mxu0
        %v2229 = vsel %vm678, %v1674, 0
        %v2232 = vsel %vm678, %v1978, 0
        %2234 = vmatprep.subr.mxu0 0.0
        %2235 = vmatpush1.msra.mxu0 %v1984
        %2236 = vmatprep.subr.mxu0 0.0
        %2237 = vmatpush1.msra.mxu0 0.0
        %2238 = vmatprep.subr.mxu0 0.0
        %2239 = vmatpush1.msra.mxu0 0.0
        %2240 = vmatprep.subr.mxu0 0.0
        %2241 = vmatpush1.msra.mxu0 0.0
        %2242 = vmatprep.subr.mxu0 0.0
        %2243 = vmatpush1.msra.mxu0 0.0
        %2244 = vmatprep.subr.mxu0 0.0
        %2245 = vmatpush1.msra.mxu0 0.0
        %2246 = vmatprep.subr.mxu0 0.0
        %2247 = vmatpush1.msra.mxu0 0.0
        %2248 = vmatprep.subr.mxu0 0.0
        %2249 = vmatpush1.msra.mxu0 0.0
        %2250 = vmatprep.subr.mxu0 0.0
        %2251 = vmatpush1.msra.mxu0 0.0
        %2252 = vmatprep.subr.mxu0 0.0
        %2253 = vmatpush1.msra.mxu0 0.0
        %2254 = vmatprep.subr.mxu0 0.0
        %2255 = vmatpush1.msra.mxu0 0.0
        %2256 = vmatprep.subr.mxu0 0.0
        %2257 = vmatpush1.msra.mxu0 0.0
        %2258 = vmatprep.subr.mxu0 0.0
        %2259 = vmatpush1.msra.mxu0 0.0
        %2260 = vmatprep.subr.mxu0 0.0
        %2261 = vmatpush1.msra.mxu0 0.0
        %2262 = vmatprep.subr.mxu0 0.0
        %2263 = vmatpush1.msra.mxu0 0.0
        %2264 = vmatprep.subr.mxu0 0.0
        %2265 = vmatpush1.msra.mxu0 0.0
        %2266 = vmatprep.subr.mxu0 0.0
        %2267 = vmatpush1.msra.mxu0 0.0
        %2268 = vmatprep.subr.mxu0 0.0
        %2269 = vmatpush1.msra.mxu0 0.0
        %2270 = vmatprep.subr.mxu0 0.0
        %2271 = vmatpush1.msra.mxu0 0.0
        %2272 = vmatprep.subr.mxu0 0.0
        %2273 = vmatpush1.msra.mxu0 0.0
        %2274 = vmatprep.subr.mxu0 0.0
        %2275 = vmatpush1.msra.mxu0 0.0
        %2276 = vmatprep.subr.mxu0 0.0
        %2277 = vmatpush1.msra.mxu0 0.0
        %2278 = vmatprep.subr.mxu0 0.0
        %2279 = vmatpush1.msra.mxu0 0.0
        %2280 = vmatprep.subr.mxu0 0.0
        %2281 = vmatpush1.msra.mxu0 0.0
        %2282 = vmatprep.subr.mxu0 0.0
        %2283 = vmatpush1.msra.mxu0 0.0
        %2284 = vmatprep.subr.mxu0 0.0
        %2285 = vmatpush1.msra.mxu0 0.0
        %2286 = vmatprep.subr.mxu0 0.0
        %2287 = vmatpush1.msra.mxu0 0.0
        %2288 = vmatprep.subr.mxu0 0.0
        %2289 = vmatpush1.msra.mxu0 0.0
        %2290 = vmatprep.subr.mxu0 0.0
        %2291 = vmatpush1.msra.mxu0 0.0
        %2292 = vmatprep.subr.mxu0 0.0
        %2293 = vmatpush1.msra.mxu0 0.0
        %2294 = vmatprep.subr.mxu0 0.0
        %2295 = vmatpush1.msra.mxu0 0.0
        %2296 = vmatprep.subr.mxu0 0.0
        %2297 = vmatpush1.msra.mxu0 0.0
        %2298 = vmatprep.mubr.f32.mxu0 0.0
        %2299 = vmatmul.mubr.f32.gmra.mrb[0].mxu0 %v2229
        %v2300 = vpop.f32.mrb[0].mxu0
        %v2301 = vadd.f32 0.0, %v2300
        %v2302 = vpop.f32.mrb[0].mxu0
        %2303 = vmatprep.mubr.f32.mxu0 0.0
        %2304 = vmatmul.mubr.f32.gmra.mrb[0].mxu0 %v2232
        %v2305 = vpop.f32.mrb[0].mxu0
        %v2306 = vadd.f32 0.0, %v2305
        %v2307 = vpop.f32.mrb[0].mxu0
        %2308 = vdwg.mxu0
        %v2309 = vsel %vm466, %v2058, 0.0
        %v2310 = vsel %vm466, %v2139, 0.0
        %v2311 = vadd.f32 %v2309, %v2310
        %v2312 = vsel %vm466, %v2220, 0.0
        %v2313 = vadd.f32 %v2311, %v2312
        %v2314 = vsel %vm466, %v2301, 0.0
        %v2315 = vadd.f32 %v2313, %v2314
        %v2316 = vsel %vm466, %v2063, 0.0
        %v2317 = vsel %vm466, %v2144, 0.0
        %v2318 = vadd.f32 %v2316, %v2317
        %v2319 = vsel %vm466, %v2225, 0.0
        %v2320 = vadd.f32 %v2318, %v2319
        %v2321 = vsel %vm466, %v2306, 0.0
        %v2322 = vadd.f32 %v2320, %v2321
        %v2323 = vld [vmem:[%s7] sm:$0x1]
        %v2325 = vlaneseq
        %v2326 = vshrl.u32 %v2325, 7
        %v2327 = vsub.s32 0, %v2326
        %v2328 = vrot.slane %v2323, %v2327
        %v2330 = vadd.f32 %v2315, %v2328
        %v2331 = vadd.f32 %v2322, %v2328
        %v2332 = vadd.f32 %v464, %v2330
        %v2333 = vadd.f32 %v465, %v2331
        %v2334 = vsel %vm466, %v2332, 0.0
        %2335 = vadd.xlane.f32.xlu0 %v2334
        %v2336 = vpop.xlane.xlu0 %2335
        %v2337 = vsel %vm466, %v2333, 0.0
        %2338 = vadd.xlane.f32.xlu0 %v2337
        %v2339 = vpop.xlane.xlu0 %2338
        %v2340 = vmul.f32 %v2336, %v473
        %v2341 = vmul.f32 %v2339, %v473
        %v2342 = vsub.f32 %v2332, %v2340
        %v2343 = vsub.f32 %v2333, %v2341
        %v2344 = vmul.f32 %v2342, %v2342
        %v2345 = vmul.f32 %v2343, %v2343
        %v2346 = vsel %vm466, %v2344, 0.0
        %2347 = vadd.xlane.f32.xlu0 %v2346
        %v2348 = vpop.xlane.xlu0 %2347
        %v2349 = vsel %vm466, %v2345, 0.0
        %2350 = vadd.xlane.f32.xlu0 %v2349
        %v2351 = vpop.xlane.xlu0 %2350
        %v2352 = vmul.f32 %v2348, %v473
        %v2353 = vmul.f32 %v2351, %v473
        %v2354 = vadd.f32 %v2352, 1e-05
        %v2355 = vadd.f32 %v2353, 1e-05
        %v2356 = vrsqrt.pop %v2354
        %v2357 = vrsqrt.pop %v2355
        %v2358 = vmul.f32 %v2342, %v2356
        %v2359 = vmul.f32 %v2343, %v2357
        %v2360 = vld [vmem:[%s8] sm:$0xff]
        %v2361 = vld [vmem:[%s8 + $0x8] sm:$0xff]
        %v2362 = vld [vmem:[%s8 + $0x10] sm:$0xff]
        %v2363 = vld [vmem:[%s8 + $0x18] sm:$0xff]
        %v2364 = vld [vmem:[%s9] sm:$0x1]
        %v2366 = vlaneseq
        %v2367 = vshrl.u32 %v2366, 7
        %v2368 = vsub.s32 0, %v2367
        %v2369 = vrot.slane %v2364, %v2368
        %v2372 = vsel %vm466, %v2358, 0
        %v2375 = vsel %vm466, %v2359, 0
        %2377 = vmatprep.subr.mxu0 0.0
        %2378 = vmatpush1.msra.mxu0 %v2360
        %2379 = vmatprep.subr.mxu0 0.0
        %2380 = vmatpush1.msra.mxu0 %v2361
        %2381 = vmatprep.subr.mxu0 0.0
        %2382 = vmatpush1.msra.mxu0 %v2362
        %2383 = vmatprep.subr.mxu0 0.0
        %2384 = vmatpush1.msra.mxu0 %v2363
        %2385 = vmatprep.subr.mxu0 0.0
        %2386 = vmatpush1.msra.mxu0 0.0
        %2387 = vmatprep.subr.mxu0 0.0
        %2388 = vmatpush1.msra.mxu0 0.0
        %2389 = vmatprep.subr.mxu0 0.0
        %2390 = vmatpush1.msra.mxu0 0.0
        %2391 = vmatprep.subr.mxu0 0.0
        %2392 = vmatpush1.msra.mxu0 0.0
        %2393 = vmatprep.subr.mxu0 0.0
        %2394 = vmatpush1.msra.mxu0 0.0
        %2395 = vmatprep.subr.mxu0 0.0
        %2396 = vmatpush1.msra.mxu0 0.0
        %2397 = vmatprep.subr.mxu0 0.0
        %2398 = vmatpush1.msra.mxu0 0.0
        %2399 = vmatprep.subr.mxu0 0.0
        %2400 = vmatpush1.msra.mxu0 0.0
        %2401 = vmatprep.subr.mxu0 0.0
        %2402 = vmatpush1.msra.mxu0 0.0
        %2403 = vmatprep.subr.mxu0 0.0
        %2404 = vmatpush1.msra.mxu0 0.0
        %2405 = vmatprep.subr.mxu0 0.0
        %2406 = vmatpush1.msra.mxu0 0.0
        %2407 = vmatprep.subr.mxu0 0.0
        %2408 = vmatpush1.msra.mxu0 0.0
        %2409 = vmatprep.subr.mxu0 0.0
        %2410 = vmatpush1.msra.mxu0 0.0
        %2411 = vmatprep.subr.mxu0 0.0
        %2412 = vmatpush1.msra.mxu0 0.0
        %2413 = vmatprep.subr.mxu0 0.0
        %2414 = vmatpush1.msra.mxu0 0.0
        %2415 = vmatprep.subr.mxu0 0.0
        %2416 = vmatpush1.msra.mxu0 0.0
        %2417 = vmatprep.subr.mxu0 0.0
        %2418 = vmatpush1.msra.mxu0 0.0
        %2419 = vmatprep.subr.mxu0 0.0
        %2420 = vmatpush1.msra.mxu0 0.0
        %2421 = vmatprep.subr.mxu0 0.0
        %2422 = vmatpush1.msra.mxu0 0.0
        %2423 = vmatprep.subr.mxu0 0.0
        %2424 = vmatpush1.msra.mxu0 0.0
        %2425 = vmatprep.subr.mxu0 0.0
        %2426 = vmatpush1.msra.mxu0 0.0
        %2427 = vmatprep.subr.mxu0 0.0
        %2428 = vmatpush1.msra.mxu0 0.0
        %2429 = vmatprep.subr.mxu0 0.0
        %2430 = vmatpush1.msra.mxu0 0.0
        %2431 = vmatprep.subr.mxu0 0.0
        %2432 = vmatpush1.msra.mxu0 0.0
        %2433 = vmatprep.subr.mxu0 0.0
        %2434 = vmatpush1.msra.mxu0 0.0
        %2435 = vmatprep.subr.mxu0 0.0
        %2436 = vmatpush1.msra.mxu0 0.0
        %2437 = vmatprep.subr.mxu0 0.0
        %2438 = vmatpush1.msra.mxu0 0.0
        %2439 = vmatprep.subr.mxu0 0.0
        %2440 = vmatpush1.msra.mxu0 0.0
        %2441 = vmatprep.mubr.f32.mxu0 0.0
        %2442 = vmatmul.mubr.f32.gmra.mrb[0].mxu0 %v2372
        %v2443 = vpop.f32.mrb[0].mxu0
        %v2444 = vadd.f32 %v2369, %v2443
        %v2445 = vpop.f32.mrb[0].mxu0
        %2446 = vmatprep.mubr.f32.mxu0 0.0
        %2447 = vmatmul.mubr.f32.gmra.mrb[0].mxu0 %v2375
        %v2448 = vpop.f32.mrb[0].mxu0
        %v2449 = vadd.f32 %v2369, %v2448
        %v2450 = vpop.f32.mrb[0].mxu0
        %2451 = vdwg.mxu0
        %v2452 = vmax.f32 %v2444, 0.0
        %v2453 = vmax.f32 %v2449, 0.0
        %v2454 = vld [vmem:[%s10] sm:$0xff]
        %v2455 = vld [vmem:[%s10 + $0x8] sm:$0xff]
        %v2456 = vld [vmem:[%s10 + $0x10] sm:$0xff]
        %v2457 = vld [vmem:[%s10 + $0x18] sm:$0xff]
        %v2458 = vld [vmem:[%s10 + $0x20] sm:$0xff]
        %v2459 = vld [vmem:[%s10 + $0x28] sm:$0xff]
        %v2460 = vld [vmem:[%s10 + $0x30] sm:$0xff]
        %v2461 = vld [vmem:[%s10 + $0x38] sm:$0xff]
        %v2462 = vld [vmem:[%s10 + $0x40] sm:$0xff]
        %v2463 = vld [vmem:[%s10 + $0x48] sm:$0xff]
        %v2464 = vld [vmem:[%s10 + $0x50] sm:$0xff]
        %v2465 = vld [vmem:[%s10 + $0x58] sm:$0xff]
        %v2466 = vld [vmem:[%s10 + $0x60] sm:$0xff]
        %v2467 = vld [vmem:[%s10 + $0x68] sm:$0xff]
        %v2468 = vld [vmem:[%s10 + $0x70] sm:$0xff]
        %v2469 = vld [vmem:[%s10 + $0x78] sm:$0xff]
        %2470 = vmatprep.subr.mxu0 0.0
        %2471 = vmatpush1.msra.mxu0 %v2454
        %2472 = vmatprep.subr.mxu0 0.0
        %2473 = vmatpush1.msra.mxu0 %v2455
        %2474 = vmatprep.subr.mxu0 0.0
        %2475 = vmatpush1.msra.mxu0 %v2456
        %2476 = vmatprep.subr.mxu0 0.0
        %2477 = vmatpush1.msra.mxu0 %v2457
        %2478 = vmatprep.subr.mxu0 0.0
        %2479 = vmatpush1.msra.mxu0 %v2458
        %2480 = vmatprep.subr.mxu0 0.0
        %2481 = vmatpush1.msra.mxu0 %v2459
        %2482 = vmatprep.subr.mxu0 0.0
        %2483 = vmatpush1.msra.mxu0 %v2460
        %2484 = vmatprep.subr.mxu0 0.0
        %2485 = vmatpush1.msra.mxu0 %v2461
        %2486 = vmatprep.subr.mxu0 0.0
        %2487 = vmatpush1.msra.mxu0 %v2462
        %2488 = vmatprep.subr.mxu0 0.0
        %2489 = vmatpush1.msra.mxu0 %v2463
        %2490 = vmatprep.subr.mxu0 0.0
        %2491 = vmatpush1.msra.mxu0 %v2464
        %2492 = vmatprep.subr.mxu0 0.0
        %2493 = vmatpush1.msra.mxu0 %v2465
        %2494 = vmatprep.subr.mxu0 0.0
        %2495 = vmatpush1.msra.mxu0 %v2466
        %2496 = vmatprep.subr.mxu0 0.0
        %2497 = vmatpush1.msra.mxu0 %v2467
        %2498 = vmatprep.subr.mxu0 0.0
        %2499 = vmatpush1.msra.mxu0 %v2468
        %2500 = vmatprep.subr.mxu0 0.0
        %2501 = vmatpush1.msra.mxu0 %v2469
        %2502 = vmatprep.subr.mxu0 0.0
        %2503 = vmatpush1.msra.mxu0 0.0
        %2504 = vmatprep.subr.mxu0 0.0
        %2505 = vmatpush1.msra.mxu0 0.0
        %2506 = vmatprep.subr.mxu0 0.0
        %2507 = vmatpush1.msra.mxu0 0.0
        %2508 = vmatprep.subr.mxu0 0.0
        %2509 = vmatpush1.msra.mxu0 0.0
        %2510 = vmatprep.subr.mxu0 0.0
        %2511 = vmatpush1.msra.mxu0 0.0
        %2512 = vmatprep.subr.mxu0 0.0
        %2513 = vmatpush1.msra.mxu0 0.0
        %2514 = vmatprep.subr.mxu0 0.0
        %2515 = vmatpush1.msra.mxu0 0.0
        %2516 = vmatprep.subr.mxu0 0.0
        %2517 = vmatpush1.msra.mxu0 0.0
        %2518 = vmatprep.subr.mxu0 0.0
        %2519 = vmatpush1.msra.mxu0 0.0
        %2520 = vmatprep.subr.mxu0 0.0
        %2521 = vmatpush1.msra.mxu0 0.0
        %2522 = vmatprep.subr.mxu0 0.0
        %2523 = vmatpush1.msra.mxu0 0.0
        %2524 = vmatprep.subr.mxu0 0.0
        %2525 = vmatpush1.msra.mxu0 0.0
        %2526 = vmatprep.subr.mxu0 0.0
        %2527 = vmatpush1.msra.mxu0 0.0
        %2528 = vmatprep.subr.mxu0 0.0
        %2529 = vmatpush1.msra.mxu0 0.0
        %2530 = vmatprep.subr.mxu0 0.0
        %2531 = vmatpush1.msra.mxu0 0.0
        %2532 = vmatprep.subr.mxu0 0.0
        %2533 = vmatpush1.msra.mxu0 0.0
        %2534 = vmatprep.mubr.f32.mxu0 0.0
        %2535 = vmatmul.mubr.f32.gmra.mrb[0].mxu0 %v2452
        %v2536 = vpop.f32.mrb[0].mxu0
        %v2537 = vadd.f32 0.0, %v2536
        %v2538 = vpop.f32.mrb[0].mxu0
        %2539 = vmatprep.mubr.f32.mxu0 0.0
        %2540 = vmatmul.mubr.f32.gmra.mrb[0].mxu0 %v2453
        %v2541 = vpop.f32.mrb[0].mxu0
        %v2542 = vadd.f32 0.0, %v2541
        %v2543 = vpop.f32.mrb[0].mxu0
        %2544 = vdwg.mxu0
        %v2545 = vadd.f32 %v2332, %v2537
        %v2546 = vadd.f32 %v2333, %v2542
        %v2547 = vld [vmem:[%s11] sm:$0x1]
        %v2549 = vlaneseq
        %v2550 = vshrl.u32 %v2549, 7
        %v2551 = vsub.s32 0, %v2550
        %v2552 = vrot.slane %v2547, %v2551
        %v2554 = vadd.f32 %v2545, %v2552
        %v2555 = vadd.f32 %v2546, %v2552
        %2556 = vst.msk [vmem:[%s448] sm:$0xff] %vm466, %v2554
        %2557 = vst.msk [vmem:[%s455] sm:$0xff] %vm466, %v2555
        %s2558 = sand.u32 %s301, 1
        %s2559 = scalar_lea.sflag [#allocation3], %s2558
        %s2560 = sand.u32 %s301, 1
        %s2561 = smul.addr %s2560, 8
        %s2562 = scalar_lea.vmem [#allocation2], %s2561
        %s2563 = sand.u32 %s327, 1
        %s2564 = scalar_lea.sflag [#allocation5], %s2563
        %s2565 = sand.u32 %s327, 1
        %s2566 = smul.addr %s2565, 8
        %s2567 = scalar_lea.vmem [#allocation4], %s2566
        // Predicated region
        $region69: #{block_forward.1} parent=67 // pred_check
          %p2568 = pneg %p311
        $region70: #{block_forward.1} parent=67 // pred_check_branch
          %2570 = sbr.rel (%p2568) target = $region72
        $region71: #{block_forward.1} parent=67 // pred_region
          %s2572 = ssub.s32 128, 128
          %2573 = vsyncadd %s2559, %s2572
          %s2574 = smul.addr %s31, 128
          %s2575 = scalar_lea.hbm %s12, %s2574
          %s2577 = sshll.u32 %s2562, 4
          %s2578 = int_to_ptr.vmem [resolvable:$true] %s2577
          %2580 = dma.vmem_to_hbm [thread:$0]  %s2578, 128, %s2575, %s2559
        $region72: #{block_forward.1} parent=67 // pred_fallthru
          _
        // Predicated region
        $region73: #{block_forward.1} parent=67 // pred_check
          %p2581 = pneg %p337
        $region74: #{block_forward.1} parent=67 // pred_check_branch
          %2583 = sbr.rel (%p2581) target = $region76
        $region75: #{block_forward.1} parent=67 // pred_region
          %s2585 = ssub.s32 128, 128
          %2586 = vsyncadd %s2564, %s2585
          %s2587 = smul.addr %s31, 128
          %s2588 = scalar_lea.hbm %s13, %s2587
          %s2590 = sshll.u32 %s2567, 4
          %s2591 = int_to_ptr.vmem [resolvable:$true] %s2590
          %2593 = dma.vmem_to_hbm [thread:$0]  %s2591, 128, %s2588, %s2564
        $region76: #{block_forward.1} parent=67 // pred_fallthru
          _
      $region68: #{block_forward.1} parent=5 // pred_fallthru
        _
      %p2594 = scmp.le.s32.totalorder 2, %s26
      // Predicated region
      $region77: #{block_forward.1} parent=5 // pred_check
        %p2595 = pneg %p2594
      $region78: #{block_forward.1} parent=5 // pred_check_branch
        %2597 = sbr.rel (%p2595) target = $region80
      $region79: #{block_forward.1} parent=5 // pred_region
        %s2598 = ssub.s32 %s26, 2
        // Predicated region
        $region81: #{block_forward.1} parent=79 // pred_check
          %p2599 = pneg %p317
        $region82: #{block_forward.1} parent=79 // pred_check_branch
          %2601 = sbr.rel (%p2599) target = $region84
        $region83: #{block_forward.1} parent=79 // pred_region
          %s2602 = sand.u32 %s302, 1
          %s2603 = scalar_lea.sflag [#allocation3], %s2602
          %s2604 = sand.u32 %s302, 1
          %s2605 = smul.addr %s2604, 8
          %s2606 = scalar_lea.vmem [#allocation2], %s2605
          %2607 = dma.done %s2603, 128
        $region84: #{block_forward.1} parent=79 // pred_fallthru
          _
        // Predicated region
        $region85: #{block_forward.1} parent=79 // pred_check
          %p2608 = pneg %p343
        $region86: #{block_forward.1} parent=79 // pred_check_branch
          %2610 = sbr.rel (%p2608) target = $region88
        $region87: #{block_forward.1} parent=79 // pred_region
          %s2611 = sand.u32 %s328, 1
          %s2612 = scalar_lea.sflag [#allocation5], %s2611
          %s2613 = sand.u32 %s328, 1
          %s2614 = smul.addr %s2613, 8
          %s2615 = scalar_lea.vmem [#allocation4], %s2614
          %2616 = dma.done %s2612, 128
        $region88: #{block_forward.1} parent=79 // pred_fallthru
          _
      $region80: #{block_forward.1} parent=5 // pred_fallthru
        _
    $region6: #{block_forward.1} parent=1 // loop_footer
      %s30 = sadd.s32 1, %s26
    $region7: #{block_forward.1} parent=1 // loop_footer_branch
      %25 = sbr.rel target = $region3
    $region8: #{block_forward.1} parent=1 // loop_exit
      _
    %2617 = vsyncpa [#allocation3], 1
    %s2618 = scalar_lea.sflag [#allocation3], 1
    %2619 = vsyncpa %s2618, 1
    %2620 = vsyncpa [#allocation5], 1
    %s2621 = scalar_lea.sflag [#allocation5], 1
    %2622 = vsyncpa %s2621, 1

</llo_original>
